<compile_context>
chip_gen: v5e
topology: v5e:2x2
jax: 0.10.0
libtpu: 0.0.40
codegen_flags: <defaults>
</compile_context>

<pallas_src>
import functools
import math

import jax
import jax.numpy as jnp
from jax import lax
from jax.experimental import pallas as pl
from jax.experimental.pallas import tpu as pltpu


_LN_EPS = 1e-5
_SQRT1_2 = 1.0 / math.sqrt(2.0)
_NUM_HEAD_OUTPUTS = 12      # type(4)+severity(1)+rot(1)+noise(1)+flip(1)+affine(4)
_HEAD_PAD = 128             # pad head outputs to a full lane width
_NEG_INF = -1e30
_VMEM_LIMIT = 64 * 1024 * 1024


# ----------------------------------------------------------------------------
# In-kernel math helpers (f32 elementwise, bf16 MXU inputs)
# ----------------------------------------------------------------------------
def _layernorm_f32(x, w):
    """Weight-only LayerNorm (bias=False, matching use_bias=False), f32 math."""
    mu = jnp.mean(x, axis=-1, keepdims=True)
    xc = x - mu
    var = jnp.mean(xc * xc, axis=-1, keepdims=True)
    return xc * lax.rsqrt(var + _LN_EPS) * w


def _gelu_erf_f32(x):
    """Exact (erf) GELU, matching PyTorch nn.GELU default, f32 math."""
    return 0.5 * x * (1.0 + lax.erf(x * _SQRT1_2))


# ----------------------------------------------------------------------------
# Pallas kernels
# ----------------------------------------------------------------------------
def _patch_embed_kernel(xp_ref, w_ref, add_ref, o_ref):
    # xp_ref: (T_pad, C*P*P) f32 with row 0 (CLS slot) and tail rows zeroed.
    # add_ref: (T_pad, D) f32 = [cls_token+pos[0]; conv_bias+pos[1:1+N]; 0...].
    y = jnp.dot(xp_ref[...].astype(jnp.bfloat16), w_ref[...],
                preferred_element_type=jnp.float32)
    o_ref[...] = y + add_ref[...]


def _trunk_kernel(x_ref, ln1_ref, qkvw_ref, projw_ref, ln2_ref, fc1_ref,
                  fc2_ref, normw_ref, headw_ref, headb_ref,
                  heads_ref, xt_scr, *, num_heads, head_dim, t_valid):
    """One grid step = one transformer block for one batch row.

    grid = (B, depth); the activation stays resident in `xt_scr` (VMEM) across
    the whole layer loop; the prediction-head epilogue runs on the last layer.
    """
    l = pl.program_id(1)
    nl = pl.num_programs(1)
    d_model = num_heads * head_dim

    @pl.when(l == 0)
    def _():
        xt_scr[...] = x_ref[...]                     # (T_pad, D) f32

    x = xt_scr[...]
    t_pad = x.shape[0]

    # ---- attention sub-block: LN1 -> QKV -> per-head softmax -> proj -> +res
    h = _layernorm_f32(x, ln1_ref[...])
    qkv = jnp.dot(h.astype(jnp.bfloat16), qkvw_ref[...],
                  preferred_element_type=jnp.float32)          # (T, 3D) f32
    # key-column mask for padded tokens (static no-op if t_valid == t_pad)
    if t_valid < t_pad:
        col = lax.broadcasted_iota(jnp.int32, (t_pad, t_pad), 1)
        key_bias = jnp.where(col < t_valid, jnp.float32(0.0),
                             jnp.float32(_NEG_INF))
    else:
        key_bias = jnp.float32(0.0)

    acc = x                                                     # residual
    for hh in range(num_heads):                                 # static unroll
        lo = hh * head_dim
        # 1/sqrt(head_dim) is pre-baked into the Q columns of qkv_w.
        q = qkv[:, lo:lo + head_dim].astype(jnp.bfloat16)
        k = qkv[:, d_model + lo:d_model + lo + head_dim].astype(jnp.bfloat16)
        v = qkv[:, 2 * d_model + lo:2 * d_model + lo + head_dim].astype(
            jnp.bfloat16)
        s = lax.dot_general(q, k, (((1,), (1,)), ((), ())),
                            preferred_element_type=jnp.float32)
        s = s + key_bias
        m = jnp.max(s, axis=-1, keepdims=True)
        p = jnp.exp(s - m)
        p = p * pl.reciprocal(jnp.sum(p, axis=-1, keepdims=True), approx=True)
        o_h = jnp.dot(p.astype(jnp.bfloat16), v,
                      preferred_element_type=jnp.float32)       # (T, hd)
        # accumulate straight into the projection output (no lane concatenate)
        acc = acc + jnp.dot(o_h.astype(jnp.bfloat16),
                            projw_ref[lo:lo + head_dim, :],
                            preferred_element_type=jnp.float32)
    x1 = acc                                                    # (T, D) f32

    # ---- MLP sub-block: LN2 -> FC1 -> GELU -> FC2 -> +residual
    h2 = _layernorm_f32(x1, ln2_ref[...])
    h2 = jnp.dot(h2.astype(jnp.bfloat16), fc1_ref[...],
                 preferred_element_type=jnp.float32)
    h2 = _gelu_erf_f32(h2)
    x2 = x1 + jnp.dot(h2.astype(jnp.bfloat16), fc2_ref[...],
                      preferred_element_type=jnp.float32)
    xt_scr[...] = x2

    # ---- epilogue on the last layer: final CLS LayerNorm + fused heads
    @pl.when(l == nl - 1)
    def _():
        cls = x2[0:1, :]                                        # (1, D)
        hn = _layernorm_f32(cls, normw_ref[...])
        logits = jnp.dot(hn.astype(jnp.bfloat16), headw_ref[...],
                         preferred_element_type=jnp.float32) + headb_ref[...]
        heads_ref[...] = logits                                 # (1, 128) dense


# ----------------------------------------------------------------------------
# pallas_call wrappers
# ----------------------------------------------------------------------------
def patch_embed(xp_pad, w, add):
    """xp_pad:(B,T_pad,CPP) f32, w:(CPP,D) bf16, add:(T_pad,D) -> (B,T_pad,D)."""
    B, T, CPP = xp_pad.shape
    D = w.shape[1]
    return pl.pallas_call(
        _patch_embed_kernel,
        out_shape=jax.ShapeDtypeStruct((B, T, D), jnp.float32),
        grid=(B,),
        in_specs=[
            pl.BlockSpec((pl.Squeezed(), T, CPP), lambda b: (b, 0, 0)),
            pl.BlockSpec((CPP, D), lambda b: (0, 0)),
            pl.BlockSpec((T, D), lambda b: (0, 0)),
        ],
        out_specs=pl.BlockSpec((pl.Squeezed(), T, D), lambda b: (b, 0, 0)),
        compiler_params=pltpu.CompilerParams(
            dimension_semantics=("parallel",),
            vmem_limit_bytes=_VMEM_LIMIT),
    )(xp_pad, w, add)


def trunk_and_heads(xt, params):
    """Fused transformer trunk + final norm + heads.  xt:(B,T_pad,D) f32."""
    B, T, D = xt.shape
    depth = params["depth"]
    Hd = params["mlp_hidden"]
    kernel = functools.partial(
        _trunk_kernel,
        num_heads=params["num_heads"],
        head_dim=params["head_dim"],
        t_valid=params["t_valid"])
    return pl.pallas_call(
        kernel,
        out_shape=jax.ShapeDtypeStruct((B, 1, _HEAD_PAD), jnp.float32),
        grid=(B, depth),
        in_specs=[
            pl.BlockSpec((pl.Squeezed(), T, D), lambda b, l: (b, 0, 0)),   # xt
            pl.BlockSpec((pl.Squeezed(), 1, D), lambda b, l: (l, 0, 0)),   # ln1
            pl.BlockSpec((pl.Squeezed(), D, 3 * D), lambda b, l: (l, 0, 0)),
            pl.BlockSpec((pl.Squeezed(), D, D), lambda b, l: (l, 0, 0)),   # proj
            pl.BlockSpec((pl.Squeezed(), 1, D), lambda b, l: (l, 0, 0)),   # ln2
            pl.BlockSpec((pl.Squeezed(), D, Hd), lambda b, l: (l, 0, 0)),  # fc1
            pl.BlockSpec((pl.Squeezed(), Hd, D), lambda b, l: (l, 0, 0)),  # fc2
            pl.BlockSpec((1, D), lambda b, l: (0, 0)),                     # norm
            pl.BlockSpec((D, _HEAD_PAD), lambda b, l: (0, 0)),             # head w
            pl.BlockSpec((1, _HEAD_PAD), lambda b, l: (0, 0)),             # head b
        ],
        out_specs=pl.BlockSpec((pl.Squeezed(), 1, _HEAD_PAD),
                               lambda b, l: (b, 0, 0)),
        scratch_shapes=[pltpu.VMEM((T, D), jnp.float32)],
        compiler_params=pltpu.CompilerParams(
            dimension_semantics=("parallel", "arbitrary"),
            vmem_limit_bytes=_VMEM_LIMIT),
    )(xt, params["ln1_w"], params["qkv_w"], params["proj_w"], params["ln2_w"],
      params["fc1_w"], params["fc2_w"], params["norm_w"], params["head_w"],
      params["head_b"])


# ----------------------------------------------------------------------------
# Parameter construction (deterministic, synthetic)
# ----------------------------------------------------------------------------
def init_params(key, *, img_size, patch_size, in_chans, embed_dim, depth,
                head_dim):
    num_patches = (img_size // patch_size) ** 2
    t_valid = num_patches + 1
    t_pad = ((t_valid + 7) // 8) * 8
    num_heads = embed_dim // head_dim
    mlp_hidden = int(embed_dim * 4.0)
    cpp = in_chans * patch_size * patch_size
    keys = iter(jax.random.split(key, 16))

    def nrm(shape, std=0.02):
        return jax.random.normal(next(keys), shape, jnp.float32) * std

    # --- patch embed (Conv2d k=s=patch == GEMM over flattened (C,P,P) patches)
    patch_w = nrm((cpp, embed_dim))
    patch_b = nrm((embed_dim,))
    cls_token = nrm((embed_dim,))
    pos_embed = nrm((t_valid, embed_dim))
    # fused additive term: row0 = cls_token + pos[0]; rows 1..N = bias + pos;
    # padded rows stay 0 (they are masked as keys inside the trunk kernel).
    patch_add = jnp.zeros((t_pad, embed_dim), jnp.float32)
    patch_add = patch_add.at[0].set(cls_token + pos_embed[0])
    patch_add = patch_add.at[1:t_valid].set(patch_b[None, :] + pos_embed[1:])

    # --- prediction heads: 6 nn.Linear heads concatenated, zero-padded to 128
    head_w = nrm((embed_dim, _NUM_HEAD_OUTPUTS))
    head_b = nrm((_NUM_HEAD_OUTPUTS,))
    head_w_pad = jnp.zeros((embed_dim, _HEAD_PAD), jnp.float32)
    head_w_pad = head_w_pad.at[:, :_NUM_HEAD_OUTPUTS].set(head_w)
    head_b_pad = jnp.zeros((1, _HEAD_PAD), jnp.float32)
    head_b_pad = head_b_pad.at[0, :_NUM_HEAD_OUTPUTS].set(head_b)

    # --- transformer trunk weights, stacked on a leading depth axis
    # TransformerTrunk(use_bias=False): no biases in LN / qkv / proj / fc1 / fc2.
    qkv_w = nrm((depth, embed_dim, 3 * embed_dim))
    # bake the 1/sqrt(head_dim) attention scale into the Q output columns
    qkv_w = qkv_w.at[:, :, :embed_dim].multiply(1.0 / math.sqrt(head_dim))
    proj_w = nrm((depth, embed_dim, embed_dim))
    fc1_w = nrm((depth, embed_dim, mlp_hidden))
    fc2_w = nrm((depth, mlp_hidden, embed_dim))

    return {
        "patch_size": patch_size,
        "num_patches": num_patches,
        "t_valid": t_valid,
        "t_pad": t_pad,
        "num_heads": num_heads,
        "head_dim": head_dim,
        "embed_dim": embed_dim,
        "depth": depth,
        "mlp_hidden": mlp_hidden,
        # matmul weights stored bf16 once; LN scales / additive terms stay f32.
        "patch_w": patch_w.astype(jnp.bfloat16),
        "patch_add": patch_add,
        "ln1_w": jnp.ones((depth, 1, embed_dim), jnp.float32),
        "qkv_w": qkv_w.astype(jnp.bfloat16),
        "proj_w": proj_w.astype(jnp.bfloat16),
        "ln2_w": jnp.ones((depth, 1, embed_dim), jnp.float32),
        "fc1_w": fc1_w.astype(jnp.bfloat16),
        "fc2_w": fc2_w.astype(jnp.bfloat16),
        "norm_w": jnp.ones((1, embed_dim), jnp.float32),
        "head_w": head_w_pad.astype(jnp.bfloat16),
        "head_b": head_b_pad,
    }


# ----------------------------------------------------------------------------
# Forward pass
# ----------------------------------------------------------------------------
def transformation_healer_forward(params, x):
    # x: NCHW float32
    B, C, Himg, Wimg = x.shape
    P = params["patch_size"]
    N = params["num_patches"]
    t_pad = params["t_pad"]
    gh, gw = Himg // P, Wimg // P

    # patch extraction (im2col): non-overlapping patches, (C, P, P) flatten
    # order (Conv2d-equivalent); row 0 / tail rows zero-padded (CLS slot + pad).
    xp = x.reshape(B, C, gh, P, gw, P)
    xp = xp.transpose(0, 2, 4, 1, 3, 5).reshape(B, N, C * P * P)
    xp_pad = jnp.pad(xp, ((0, 0), (1, t_pad - 1 - N), (0, 0)))

    # patch projection + bias + pos embed + CLS row, all fused in-kernel
    tokens = patch_embed(xp_pad, params["patch_w"], params["patch_add"])

    # whole trunk + final CLS LayerNorm + all prediction heads in one kernel
    heads = trunk_and_heads(tokens, params)[:, 0, :_NUM_HEAD_OUTPUTS]

    transform_type_logits = heads[:, 0:4]
    severity = jax.nn.sigmoid(heads[:, 4:5])
    rotation_angle = jnp.tanh(heads[:, 5:6]) * 30.0
    noise_std = jax.nn.sigmoid(heads[:, 6:7]) * 0.5
    h_flip = jax.nn.sigmoid(heads[:, 7:8])
    affine = heads[:, 8:12]
    return {
        "transform_type_logits": transform_type_logits,
        "severity": severity,
        "rotation_angle": rotation_angle,
        "noise_std": noise_std,
        "h_flip": h_flip,
        "translate_x": jnp.tanh(affine[:, 0]) * 0.1,
        "translate_y": jnp.tanh(affine[:, 1]) * 0.1,
        "shear_x": jnp.tanh(affine[:, 2]) * 15.0,
        "shear_y": jnp.tanh(affine[:, 3]) * 15.0,
    }


# ----------------------------------------------------------------------------
# Demo
# ----------------------------------------------------------------------------
if __name__ == "__main__":
    # Small shapes consistent with the module: B=2, in_chans=3, img=16,
    # patch=8 (-> 4 patches + 1 CLS = 5 tokens, padded to 8), embed_dim=128,
    # depth=2, head_dim=32 (-> 4 heads), mlp_hidden=512.
    key = jax.random.PRNGKey(0)
    pkey, xkey = jax.random.split(key)
    params = init_params(
        pkey, img_size=16, patch_size=8, in_chans=3,
        embed_dim=128, depth=2, head_dim=32,
    )
    x = jax.random.normal(xkey, (2, 3, 16, 16), jnp.float32)  # NCHW

    fwd = jax.jit(functools.partial(transformation_healer_forward, params))
    out = fwd(x)
    jax.block_until_ready(out)

    # light sanity checks on output shapes / finiteness
    assert out["transform_type_logits"].shape == (2, 4)
    assert out["severity"].shape == (2, 1)
    assert out["rotation_angle"].shape == (2, 1)
    assert out["noise_std"].shape == (2, 1)
    assert out["h_flip"].shape == (2, 1)
    assert out["translate_x"].shape == (2,)
    assert out["shear_y"].shape == (2,)
    for v in out.values():
        assert bool(jnp.all(jnp.isfinite(v)))
    print("KERNEL_OK")
</pallas_src>

<mosaic_0001>
module attributes {stable_mosaic.version = 11 : i64} {
  func.func @_patch_embed_kernel(%arg0: i32, %arg1: memref<1x8x192xf32, #tpu.memory_space<vmem>>, %arg2: memref<192x128xbf16, #tpu.memory_space<vmem>>, %arg3: memref<8x128xf32, #tpu.memory_space<vmem>>, %arg4: memref<1x8x128xf32, #tpu.memory_space<vmem>>) attributes {dimension_semantics = [#tpu.dimension_semantics<parallel>], iteration_bounds = array<i64: 2>, scalar_prefetch = 0 : i64, scratch_operands = 0 : i64, tpu.core_type = #tpu.core_type<tc>, window_params = [{transform_indices = @transform_0, window_bounds = array<i64: 1, 8, 192>}, {pipeline_mode = #tpu.pipeline_mode<synchronous>, transform_indices = @transform_1, window_bounds = array<i64: 192, 128>}, {pipeline_mode = #tpu.pipeline_mode<synchronous>, transform_indices = @transform_2, window_bounds = array<i64: 8, 128>}, {transform_indices = @transform_3, window_bounds = array<i64: 1, 8, 128>}]} {
    %c0 = arith.constant 0 : index
    %c0_0 = arith.constant 0 : index
    %c0_1 = arith.constant 0 : index
    %0 = vector.load %arg1[%c0, %c0_0, %c0_1] : memref<1x8x192xf32, #tpu.memory_space<vmem>>, vector<1x8x192xf32>
    %1 = vector.shape_cast %0 : vector<1x8x192xf32> to vector<8x192xf32>
    %2 = arith.truncf %1 : vector<8x192xf32> to vector<8x192xbf16>
    %c0_2 = arith.constant 0 : index
    %c0_3 = arith.constant 0 : index
    %3 = vector.load %arg2[%c0_2, %c0_3] : memref<192x128xbf16, #tpu.memory_space<vmem>>, vector<192x128xbf16>
    %cst = arith.constant dense<0.000000e+00> : vector<8x128xf32>
    %4 = tpu.matmul %2, %3, %cst {dimension_numbers = #tpu.dot_dimension_numbers<[1], [0], [0], [1], [0, 0, 1, 1], [], []>} : vector<8x192xbf16>, vector<192x128xbf16>, vector<8x128xf32> -> vector<8x128xf32>
    %c0_4 = arith.constant 0 : index
    %c0_5 = arith.constant 0 : index
    %5 = vector.load %arg3[%c0_4, %c0_5] : memref<8x128xf32, #tpu.memory_space<vmem>>, vector<8x128xf32>
    %6 = arith.addf %4, %5 : vector<8x128xf32>
    %c0_6 = arith.constant 0 : index
    %c0_7 = arith.constant 0 : index
    %c0_8 = arith.constant 0 : index
    %7 = vector.load %arg4[%c0_6, %c0_7, %c0_8] : memref<1x8x128xf32, #tpu.memory_space<vmem>>, vector<1x8x128xf32>
    %8 = vector.shape_cast %7 : vector<1x8x128xf32> to vector<8x128xf32>
    %9 = vector.shape_cast %6 : vector<8x128xf32> to vector<1x8x128xf32>
    tpu.vector_store %arg4[%c0_6, %c0_7, %c0_8], %9 {strides = array<i32>} : memref<1x8x128xf32, #tpu.memory_space<vmem>>, vector<1x8x128xf32>,
    return
  }
  func.func @transform_0(%arg0: i32) -> (i32, i32, i32) {
    %c0_i32 = arith.constant 0 : i32
    %c0_i32_0 = arith.constant 0 : i32
    %c0_i32_1 = arith.constant 0 : i32
    return %arg0, %c0_i32, %c0_i32_0 : i32, i32, i32
  }
  func.func @transform_1(%arg0: i32) -> (i32, i32) {
    %c0_i32 = arith.constant 0 : i32
    %c0_i32_0 = arith.constant 0 : i32
    %c0_i32_1 = arith.constant 0 : i32
    return %c0_i32, %c0_i32_0 : i32, i32
  }
  func.func @transform_2(%arg0: i32) -> (i32, i32) {
    %c0_i32 = arith.constant 0 : i32
    %c0_i32_0 = arith.constant 0 : i32
    %c0_i32_1 = arith.constant 0 : i32
    return %c0_i32, %c0_i32_0 : i32, i32
  }
  func.func @transform_3(%arg0: i32) -> (i32, i32, i32) {
    %c0_i32 = arith.constant 0 : i32
    %c0_i32_0 = arith.constant 0 : i32
    %c0_i32_1 = arith.constant 0 : i32
    return %arg0, %c0_i32, %c0_i32_0 : i32, i32, i32
  }
}

module attributes {stable_mosaic.version = 11 : i64} {
  func.func @_trunk_kernel(%arg0: i32, %arg1: i32, %arg2: memref<1x8x128xf32, #tpu.memory_space<vmem>>, %arg3: memref<1x1x128xf32, #tpu.memory_space<vmem>>, %arg4: memref<1x128x384xbf16, #tpu.memory_space<vmem>>, %arg5: memref<1x128x128xbf16, #tpu.memory_space<vmem>>, %arg6: memref<1x1x128xf32, #tpu.memory_space<vmem>>, %arg7: memref<1x128x512xbf16, #tpu.memory_space<vmem>>, %arg8: memref<1x512x128xbf16, #tpu.memory_space<vmem>>, %arg9: memref<1x128xf32, #tpu.memory_space<vmem>>, %arg10: memref<128x128xbf16, #tpu.memory_space<vmem>>, %arg11: memref<1x128xf32, #tpu.memory_space<vmem>>, %arg12: memref<1x1x128xf32, #tpu.memory_space<vmem>>, %arg13: memref<8x128xf32, #tpu.memory_space<vmem>>) attributes {dimension_semantics = [#tpu.dimension_semantics<parallel>, #tpu.dimension_semantics<arbitrary>], iteration_bounds = array<i64: 2, 2>, scalar_prefetch = 0 : i64, scratch_operands = 1 : i64, tpu.core_type = #tpu.core_type<tc>, window_params = [{transform_indices = @transform_0, window_bounds = array<i64: 1, 8, 128>}, {transform_indices = @transform_1, window_bounds = array<i64: 1, 1, 128>}, {transform_indices = @transform_2, window_bounds = array<i64: 1, 128, 384>}, {transform_indices = @transform_3, window_bounds = array<i64: 1, 128, 128>}, {transform_indices = @transform_4, window_bounds = array<i64: 1, 1, 128>}, {transform_indices = @transform_5, window_bounds = array<i64: 1, 128, 512>}, {transform_indices = @transform_6, window_bounds = array<i64: 1, 512, 128>}, {pipeline_mode = #tpu.pipeline_mode<synchronous>, transform_indices = @transform_7, window_bounds = array<i64: 1, 128>}, {pipeline_mode = #tpu.pipeline_mode<synchronous>, transform_indices = @transform_8, window_bounds = array<i64: 128, 128>}, {pipeline_mode = #tpu.pipeline_mode<synchronous>, transform_indices = @transform_9, window_bounds = array<i64: 1, 128>}, {transform_indices = @transform_10, window_bounds = array<i64: 1, 1, 128>}]} {
    %c0_i32 = arith.constant 0 : i32
    %0 = arith.cmpi eq, %arg1, %c0_i32 : i32
    %1 = arith.extui %0 : i1 to i32
    %c0_i32_0 = arith.constant 0 : i32
    %2 = arith.cmpi ne, %1, %c0_i32_0 : i32
    scf.if %2 {
      %c0_66 = arith.constant 0 : index
      %c0_67 = arith.constant 0 : index
      %c0_68 = arith.constant 0 : index
      %175 = vector.load %arg2[%c0_66, %c0_67, %c0_68] : memref<1x8x128xf32, #tpu.memory_space<vmem>>, vector<1x8x128xf32>
      %176 = vector.shape_cast %175 : vector<1x8x128xf32> to vector<8x128xf32>
      %c0_69 = arith.constant 0 : index
      %c0_70 = arith.constant 0 : index
      %177 = vector.load %arg13[%c0_69, %c0_70] : memref<8x128xf32, #tpu.memory_space<vmem>>, vector<8x128xf32>
      tpu.vector_store %arg13[%c0_69, %c0_70], %176 {strides = array<i32>} : memref<8x128xf32, #tpu.memory_space<vmem>>, vector<8x128xf32>,
    } else {
    }
    %c0 = arith.constant 0 : index
    %c0_1 = arith.constant 0 : index
    %3 = vector.load %arg13[%c0, %c0_1] : memref<8x128xf32, #tpu.memory_space<vmem>>, vector<8x128xf32>
    %c0_2 = arith.constant 0 : index
    %c0_3 = arith.constant 0 : index
    %c0_4 = arith.constant 0 : index
    %4 = vector.load %arg3[%c0_2, %c0_3, %c0_4] : memref<1x1x128xf32, #tpu.memory_space<vmem>>, vector<1x1x128xf32>
    %5 = vector.shape_cast %4 : vector<1x1x128xf32> to vector<1x128xf32>
    %cst = arith.constant dense<0.000000e+00> : vector<8xf32>
    %6 = vector.multi_reduction <add>, %3, %cst [1] : vector<8x128xf32> to vector<8xf32>
    %7 = vector.shape_cast %6 : vector<8xf32> to vector<8x1xf32>
    %cst_5 = arith.constant 1.280000e+02 : f32
    %8 = vector.broadcast %cst_5 : f32 to vector<8x1xf32>
    %9 = arith.divf %7, %8 : vector<8x1xf32>
    %10 = vector.broadcast %9 : vector<8x1xf32> to vector<8x128xf32>
    %11 = arith.subf %3, %10 : vector<8x128xf32>
    %12 = arith.mulf %11, %11 : vector<8x128xf32>
    %cst_6 = arith.constant dense<0.000000e+00> : vector<8xf32>
    %13 = vector.multi_reduction <add>, %12, %cst_6 [1] : vector<8x128xf32> to vector<8xf32>
    %14 = vector.shape_cast %13 : vector<8xf32> to vector<8x1xf32>
    %cst_7 = arith.constant 1.280000e+02 : f32
    %15 = vector.broadcast %cst_7 : f32 to vector<8x1xf32>
    %16 = arith.divf %14, %15 : vector<8x1xf32>
    %cst_8 = arith.constant 9.99999974E-6 : f32
    %17 = vector.broadcast %cst_8 : f32 to vector<8x1xf32>
    %18 = arith.addf %16, %17 : vector<8x1xf32>
    %19 = math.rsqrt %18 : vector<8x1xf32>
    %20 = vector.broadcast %19 : vector<8x1xf32> to vector<8x128xf32>
    %21 = arith.mulf %11, %20 : vector<8x128xf32>
    %22 = vector.broadcast %5 : vector<1x128xf32> to vector<8x128xf32>
    %23 = arith.mulf %21, %22 : vector<8x128xf32>
    %24 = arith.truncf %23 : vector<8x128xf32> to vector<8x128xbf16>
    %c0_9 = arith.constant 0 : index
    %c0_10 = arith.constant 0 : index
    %c0_11 = arith.constant 0 : index
    %25 = vector.load %arg4[%c0_9, %c0_10, %c0_11] : memref<1x128x384xbf16, #tpu.memory_space<vmem>>, vector<1x128x384xbf16>
    %26 = vector.shape_cast %25 : vector<1x128x384xbf16> to vector<128x384xbf16>
    %cst_12 = arith.constant dense<0.000000e+00> : vector<8x384xf32>
    %27 = tpu.matmul %24, %26, %cst_12 {dimension_numbers = #tpu.dot_dimension_numbers<[1], [0], [0], [1], [0, 0, 1, 1], [], []>} : vector<8x128xbf16>, vector<128x384xbf16>, vector<8x384xf32> -> vector<8x384xf32>
    %28 = tpu.iota {dimensions = array<i32: 1>} : vector<8x8xi32>
    %c5_i32 = arith.constant 5 : i32
    %29 = vector.broadcast %c5_i32 : i32 to vector<8x8xi32>
    %30 = arith.cmpi slt, %28, %29 : vector<8x8xi32>
    %cst_13 = arith.constant 0.000000e+00 : f32
    %cst_14 = arith.constant -1.000000e+30 : f32
    %31 = vector.broadcast %cst_13 : f32 to vector<8x8xf32>
    %32 = vector.broadcast %cst_14 : f32 to vector<8x8xf32>
    %33 = arith.select %30, %31, %32 : vector<8x8xi1>, vector<8x8xf32>
    %34 = vector.extract_strided_slice %27 {offsets = [0, 0], sizes = [8, 32], strides = [1, 1]} : vector<8x384xf32> to vector<8x32xf32>
    %35 = arith.truncf %34 : vector<8x32xf32> to vector<8x32xbf16>
    %36 = vector.extract_strided_slice %27 {offsets = [0, 128], sizes = [8, 32], strides = [1, 1]} : vector<8x384xf32> to vector<8x32xf32>
    %37 = arith.truncf %36 : vector<8x32xf32> to vector<8x32xbf16>
    %38 = vector.extract_strided_slice %27 {offsets = [0, 256], sizes = [8, 32], strides = [1, 1]} : vector<8x384xf32> to vector<8x32xf32>
    %39 = arith.truncf %38 : vector<8x32xf32> to vector<8x32xbf16>
    %cst_15 = arith.constant dense<0.000000e+00> : vector<8x8xf32>
    %40 = tpu.matmul %35, %37, %cst_15 {dimension_numbers = #tpu.dot_dimension_numbers<[1], [1], [0], [0], [0, 0, 1, 0], [], []>} : vector<8x32xbf16>, vector<8x32xbf16>, vector<8x8xf32> -> vector<8x8xf32>
    %41 = arith.addf %40, %33 : vector<8x8xf32>
    %cst_16 = arith.constant dense<0xFF800000> : vector<8xf32>
    %42 = vector.multi_reduction <maximumf>, %41, %cst_16 [1] : vector<8x8xf32> to vector<8xf32>
    %43 = vector.shape_cast %42 : vector<8xf32> to vector<8x1xf32>
    %44 = vector.broadcast %43 : vector<8x1xf32> to vector<8x8xf32>
    %45 = arith.subf %41, %44 : vector<8x8xf32>
    %46 = math.exp %45 : vector<8x8xf32>
    %cst_17 = arith.constant dense<0.000000e+00> : vector<8xf32>
    %47 = vector.multi_reduction <add>, %46, %cst_17 [1] : vector<8x8xf32> to vector<8xf32>
    %48 = vector.shape_cast %47 : vector<8xf32> to vector<8x1xf32>
    %49 = tpu.reciprocal %48 {approx = true} : vector<8x1xf32> -> vector<8x1xf32>
    %50 = vector.broadcast %49 : vector<8x1xf32> to vector<8x8xf32>
    %51 = arith.mulf %46, %50 : vector<8x8xf32>
    %52 = arith.truncf %51 : vector<8x8xf32> to vector<8x8xbf16>
    %cst_18 = arith.constant dense<0.000000e+00> : vector<8x32xf32>
    %53 = tpu.matmul %52, %39, %cst_18 {dimension_numbers = #tpu.dot_dimension_numbers<[1], [0], [0], [1], [0, 0, 1, 1], [], []>} : vector<8x8xbf16>, vector<8x32xbf16>, vector<8x32xf32> -> vector<8x32xf32>
    %54 = arith.truncf %53 : vector<8x32xf32> to vector<8x32xbf16>
    %c0_19 = arith.constant 0 : index
    %c0_20 = arith.constant 0 : index
    %c0_21 = arith.constant 0 : index
    %55 = vector.load %arg5[%c0_19, %c0_20, %c0_21] : memref<1x128x128xbf16, #tpu.memory_space<vmem>>, vector<1x32x128xbf16>
    %56 = vector.shape_cast %55 : vector<1x32x128xbf16> to vector<32x128xbf16>
    %cst_22 = arith.constant dense<0.000000e+00> : vector<8x128xf32>
    %57 = tpu.matmul %54, %56, %cst_22 {dimension_numbers = #tpu.dot_dimension_numbers<[1], [0], [0], [1], [0, 0, 1, 1], [], []>} : vector<8x32xbf16>, vector<32x128xbf16>, vector<8x128xf32> -> vector<8x128xf32>
    %58 = arith.addf %3, %57 : vector<8x128xf32>
    %59 = vector.extract_strided_slice %27 {offsets = [0, 32], sizes = [8, 32], strides = [1, 1]} : vector<8x384xf32> to vector<8x32xf32>
    %60 = arith.truncf %59 : vector<8x32xf32> to vector<8x32xbf16>
    %61 = vector.extract_strided_slice %27 {offsets = [0, 160], sizes = [8, 32], strides = [1, 1]} : vector<8x384xf32> to vector<8x32xf32>
    %62 = arith.truncf %61 : vector<8x32xf32> to vector<8x32xbf16>
    %63 = vector.extract_strided_slice %27 {offsets = [0, 288], sizes = [8, 32], strides = [1, 1]} : vector<8x384xf32> to vector<8x32xf32>
    %64 = arith.truncf %63 : vector<8x32xf32> to vector<8x32xbf16>
    %cst_23 = arith.constant dense<0.000000e+00> : vector<8x8xf32>
    %65 = tpu.matmul %60, %62, %cst_23 {dimension_numbers = #tpu.dot_dimension_numbers<[1], [1], [0], [0], [0, 0, 1, 0], [], []>} : vector<8x32xbf16>, vector<8x32xbf16>, vector<8x8xf32> -> vector<8x8xf32>
    %66 = arith.addf %65, %33 : vector<8x8xf32>
    %cst_24 = arith.constant dense<0xFF800000> : vector<8xf32>
    %67 = vector.multi_reduction <maximumf>, %66, %cst_24 [1] : vector<8x8xf32> to vector<8xf32>
    %68 = vector.shape_cast %67 : vector<8xf32> to vector<8x1xf32>
    %69 = vector.broadcast %68 : vector<8x1xf32> to vector<8x8xf32>
    %70 = arith.subf %66, %69 : vector<8x8xf32>
    %71 = math.exp %70 : vector<8x8xf32>
    %cst_25 = arith.constant dense<0.000000e+00> : vector<8xf32>
    %72 = vector.multi_reduction <add>, %71, %cst_25 [1] : vector<8x8xf32> to vector<8xf32>
    %73 = vector.shape_cast %72 : vector<8xf32> to vector<8x1xf32>
    %74 = tpu.reciprocal %73 {approx = true} : vector<8x1xf32> -> vector<8x1xf32>
    %75 = vector.broadcast %74 : vector<8x1xf32> to vector<8x8xf32>
    %76 = arith.mulf %71, %75 : vector<8x8xf32>
    %77 = arith.truncf %76 : vector<8x8xf32> to vector<8x8xbf16>
    %cst_26 = arith.constant dense<0.000000e+00> : vector<8x32xf32>
    %78 = tpu.matmul %77, %64, %cst_26 {dimension_numbers = #tpu.dot_dimension_numbers<[1], [0], [0], [1], [0, 0, 1, 1], [], []>} : vector<8x8xbf16>, vector<8x32xbf16>, vector<8x32xf32> -> vector<8x32xf32>
    %79 = arith.truncf %78 : vector<8x32xf32> to vector<8x32xbf16>
    %c0_27 = arith.constant 0 : index
    %c32 = arith.constant 32 : index
    %c0_28 = arith.constant 0 : index
    %80 = vector.load %arg5[%c0_27, %c32, %c0_28] : memref<1x128x128xbf16, #tpu.memory_space<vmem>>, vector<1x32x128xbf16>
    %81 = vector.shape_cast %80 : vector<1x32x128xbf16> to vector<32x128xbf16>
    %cst_29 = arith.constant dense<0.000000e+00> : vector<8x128xf32>
    %82 = tpu.matmul %79, %81, %cst_29 {dimension_numbers = #tpu.dot_dimension_numbers<[1], [0], [0], [1], [0, 0, 1, 1], [], []>} : vector<8x32xbf16>, vector<32x128xbf16>, vector<8x128xf32> -> vector<8x128xf32>
    %83 = arith.addf %58, %82 : vector<8x128xf32>
    %84 = vector.extract_strided_slice %27 {offsets = [0, 64], sizes = [8, 32], strides = [1, 1]} : vector<8x384xf32> to vector<8x32xf32>
    %85 = arith.truncf %84 : vector<8x32xf32> to vector<8x32xbf16>
    %86 = vector.extract_strided_slice %27 {offsets = [0, 192], sizes = [8, 32], strides = [1, 1]} : vector<8x384xf32> to vector<8x32xf32>
    %87 = arith.truncf %86 : vector<8x32xf32> to vector<8x32xbf16>
    %88 = vector.extract_strided_slice %27 {offsets = [0, 320], sizes = [8, 32], strides = [1, 1]} : vector<8x384xf32> to vector<8x32xf32>
    %89 = arith.truncf %88 : vector<8x32xf32> to vector<8x32xbf16>
    %cst_30 = arith.constant dense<0.000000e+00> : vector<8x8xf32>
    %90 = tpu.matmul %85, %87, %cst_30 {dimension_numbers = #tpu.dot_dimension_numbers<[1], [1], [0], [0], [0, 0, 1, 0], [], []>} : vector<8x32xbf16>, vector<8x32xbf16>, vector<8x8xf32> -> vector<8x8xf32>
    %91 = arith.addf %90, %33 : vector<8x8xf32>
    %cst_31 = arith.constant dense<0xFF800000> : vector<8xf32>
    %92 = vector.multi_reduction <maximumf>, %91, %cst_31 [1] : vector<8x8xf32> to vector<8xf32>
    %93 = vector.shape_cast %92 : vector<8xf32> to vector<8x1xf32>
    %94 = vector.broadcast %93 : vector<8x1xf32> to vector<8x8xf32>
    %95 = arith.subf %91, %94 : vector<8x8xf32>
    %96 = math.exp %95 : vector<8x8xf32>
    %cst_32 = arith.constant dense<0.000000e+00> : vector<8xf32>
    %97 = vector.multi_reduction <add>, %96, %cst_32 [1] : vector<8x8xf32> to vector<8xf32>
    %98 = vector.shape_cast %97 : vector<8xf32> to vector<8x1xf32>
    %99 = tpu.reciprocal %98 {approx = true} : vector<8x1xf32> -> vector<8x1xf32>
    %100 = vector.broadcast %99 : vector<8x1xf32> to vector<8x8xf32>
    %101 = arith.mulf %96, %100 : vector<8x8xf32>
    %102 = arith.truncf %101 : vector<8x8xf32> to vector<8x8xbf16>
    %cst_33 = arith.constant dense<0.000000e+00> : vector<8x32xf32>
    %103 = tpu.matmul %102, %89, %cst_33 {dimension_numbers = #tpu.dot_dimension_numbers<[1], [0], [0], [1], [0, 0, 1, 1], [], []>} : vector<8x8xbf16>, vector<8x32xbf16>, vector<8x32xf32> -> vector<8x32xf32>
    %104 = arith.truncf %103 : vector<8x32xf32> to vector<8x32xbf16>
    %c0_34 = arith.constant 0 : index
    %c64 = arith.constant 64 : index
    %c0_35 = arith.constant 0 : index
    %105 = vector.load %arg5[%c0_34, %c64, %c0_35] : memref<1x128x128xbf16, #tpu.memory_space<vmem>>, vector<1x32x128xbf16>
    %106 = vector.shape_cast %105 : vector<1x32x128xbf16> to vector<32x128xbf16>
    %cst_36 = arith.constant dense<0.000000e+00> : vector<8x128xf32>
    %107 = tpu.matmul %104, %106, %cst_36 {dimension_numbers = #tpu.dot_dimension_numbers<[1], [0], [0], [1], [0, 0, 1, 1], [], []>} : vector<8x32xbf16>, vector<32x128xbf16>, vector<8x128xf32> -> vector<8x128xf32>
    %108 = arith.addf %83, %107 : vector<8x128xf32>
    %109 = vector.extract_strided_slice %27 {offsets = [0, 96], sizes = [8, 32], strides = [1, 1]} : vector<8x384xf32> to vector<8x32xf32>
    %110 = arith.truncf %109 : vector<8x32xf32> to vector<8x32xbf16>
    %111 = vector.extract_strided_slice %27 {offsets = [0, 224], sizes = [8, 32], strides = [1, 1]} : vector<8x384xf32> to vector<8x32xf32>
    %112 = arith.truncf %111 : vector<8x32xf32> to vector<8x32xbf16>
    %113 = vector.extract_strided_slice %27 {offsets = [0, 352], sizes = [8, 32], strides = [1, 1]} : vector<8x384xf32> to vector<8x32xf32>
    %114 = arith.truncf %113 : vector<8x32xf32> to vector<8x32xbf16>
    %cst_37 = arith.constant dense<0.000000e+00> : vector<8x8xf32>
    %115 = tpu.matmul %110, %112, %cst_37 {dimension_numbers = #tpu.dot_dimension_numbers<[1], [1], [0], [0], [0, 0, 1, 0], [], []>} : vector<8x32xbf16>, vector<8x32xbf16>, vector<8x8xf32> -> vector<8x8xf32>
    %116 = arith.addf %115, %33 : vector<8x8xf32>
    %cst_38 = arith.constant dense<0xFF800000> : vector<8xf32>
    %117 = vector.multi_reduction <maximumf>, %116, %cst_38 [1] : vector<8x8xf32> to vector<8xf32>
    %118 = vector.shape_cast %117 : vector<8xf32> to vector<8x1xf32>
    %119 = vector.broadcast %118 : vector<8x1xf32> to vector<8x8xf32>
    %120 = arith.subf %116, %119 : vector<8x8xf32>
    %121 = math.exp %120 : vector<8x8xf32>
    %cst_39 = arith.constant dense<0.000000e+00> : vector<8xf32>
    %122 = vector.multi_reduction <add>, %121, %cst_39 [1] : vector<8x8xf32> to vector<8xf32>
    %123 = vector.shape_cast %122 : vector<8xf32> to vector<8x1xf32>
    %124 = tpu.reciprocal %123 {approx = true} : vector<8x1xf32> -> vector<8x1xf32>
    %125 = vector.broadcast %124 : vector<8x1xf32> to vector<8x8xf32>
    %126 = arith.mulf %121, %125 : vector<8x8xf32>
    %127 = arith.truncf %126 : vector<8x8xf32> to vector<8x8xbf16>
    %cst_40 = arith.constant dense<0.000000e+00> : vector<8x32xf32>
    %128 = tpu.matmul %127, %114, %cst_40 {dimension_numbers = #tpu.dot_dimension_numbers<[1], [0], [0], [1], [0, 0, 1, 1], [], []>} : vector<8x8xbf16>, vector<8x32xbf16>, vector<8x32xf32> -> vector<8x32xf32>
    %129 = arith.truncf %128 : vector<8x32xf32> to vector<8x32xbf16>
    %c0_41 = arith.constant 0 : index
    %c96 = arith.constant 96 : index
    %c0_42 = arith.constant 0 : index
    %130 = vector.load %arg5[%c0_41, %c96, %c0_42] : memref<1x128x128xbf16, #tpu.memory_space<vmem>>, vector<1x32x128xbf16>
    %131 = vector.shape_cast %130 : vector<1x32x128xbf16> to vector<32x128xbf16>
    %cst_43 = arith.constant dense<0.000000e+00> : vector<8x128xf32>
    %132 = tpu.matmul %129, %131, %cst_43 {dimension_numbers = #tpu.dot_dimension_numbers<[1], [0], [0], [1], [0, 0, 1, 1], [], []>} : vector<8x32xbf16>, vector<32x128xbf16>, vector<8x128xf32> -> vector<8x128xf32>
    %133 = arith.addf %108, %132 : vector<8x128xf32>
    %c0_44 = arith.constant 0 : index
    %c0_45 = arith.constant 0 : index
    %c0_46 = arith.constant 0 : index
    %134 = vector.load %arg6[%c0_44, %c0_45, %c0_46] : memref<1x1x128xf32, #tpu.memory_space<vmem>>, vector<1x1x128xf32>
    %135 = vector.shape_cast %134 : vector<1x1x128xf32> to vector<1x128xf32>
    %cst_47 = arith.constant dense<0.000000e+00> : vector<8xf32>
    %136 = vector.multi_reduction <add>, %133, %cst_47 [1] : vector<8x128xf32> to vector<8xf32>
    %137 = vector.shape_cast %136 : vector<8xf32> to vector<8x1xf32>
    %cst_48 = arith.constant 1.280000e+02 : f32
    %138 = vector.broadcast %cst_48 : f32 to vector<8x1xf32>
    %139 = arith.divf %137, %138 : vector<8x1xf32>
    %140 = vector.broadcast %139 : vector<8x1xf32> to vector<8x128xf32>
    %141 = arith.subf %133, %140 : vector<8x128xf32>
    %142 = arith.mulf %141, %141 : vector<8x128xf32>
    %cst_49 = arith.constant dense<0.000000e+00> : vector<8xf32>
    %143 = vector.multi_reduction <add>, %142, %cst_49 [1] : vector<8x128xf32> to vector<8xf32>
    %144 = vector.shape_cast %143 : vector<8xf32> to vector<8x1xf32>
    %cst_50 = arith.constant 1.280000e+02 : f32
    %145 = vector.broadcast %cst_50 : f32 to vector<8x1xf32>
    %146 = arith.divf %144, %145 : vector<8x1xf32>
    %cst_51 = arith.constant 9.99999974E-6 : f32
    %147 = vector.broadcast %cst_51 : f32 to vector<8x1xf32>
    %148 = arith.addf %146, %147 : vector<8x1xf32>
    %149 = math.rsqrt %148 : vector<8x1xf32>
    %150 = vector.broadcast %149 : vector<8x1xf32> to vector<8x128xf32>
    %151 = arith.mulf %141, %150 : vector<8x128xf32>
    %152 = vector.broadcast %135 : vector<1x128xf32> to vector<8x128xf32>
    %153 = arith.mulf %151, %152 : vector<8x128xf32>
    %154 = arith.truncf %153 : vector<8x128xf32> to vector<8x128xbf16>
    %c0_52 = arith.constant 0 : index
    %c0_53 = arith.constant 0 : index
    %c0_54 = arith.constant 0 : index
    %155 = vector.load %arg7[%c0_52, %c0_53, %c0_54] : memref<1x128x512xbf16, #tpu.memory_space<vmem>>, vector<1x128x512xbf16>
    %156 = vector.shape_cast %155 : vector<1x128x512xbf16> to vector<128x512xbf16>
    %cst_55 = arith.constant dense<0.000000e+00> : vector<8x512xf32>
    %157 = tpu.matmul %154, %156, %cst_55 {dimension_numbers = #tpu.dot_dimension_numbers<[1], [0], [0], [1], [0, 0, 1, 1], [], []>} : vector<8x128xbf16>, vector<128x512xbf16>, vector<8x512xf32> -> vector<8x512xf32>
    %cst_56 = arith.constant 5.000000e-01 : f32
    %158 = vector.broadcast %cst_56 : f32 to vector<8x512xf32>
    %159 = arith.mulf %158, %157 : vector<8x512xf32>
    %cst_57 = arith.constant 0.707106769 : f32
    %160 = vector.broadcast %cst_57 : f32 to vector<8x512xf32>
    %161 = arith.mulf %157, %160 : vector<8x512xf32>
    %162 = math.erf %161 : vector<8x512xf32>
    %cst_58 = arith.constant 1.000000e+00 : f32
    %163 = vector.broadcast %cst_58 : f32 to vector<8x512xf32>
    %164 = arith.addf %163, %162 : vector<8x512xf32>
    %165 = arith.mulf %159, %164 : vector<8x512xf32>
    %166 = arith.truncf %165 : vector<8x512xf32> to vector<8x512xbf16>
    %c0_59 = arith.constant 0 : index
    %c0_60 = arith.constant 0 : index
    %c0_61 = arith.constant 0 : index
    %167 = vector.load %arg8[%c0_59, %c0_60, %c0_61] : memref<1x512x128xbf16, #tpu.memory_space<vmem>>, vector<1x512x128xbf16>
    %168 = vector.shape_cast %167 : vector<1x512x128xbf16> to vector<512x128xbf16>
    %cst_62 = arith.constant dense<0.000000e+00> : vector<8x128xf32>
    %169 = tpu.matmul %166, %168, %cst_62 {dimension_numbers = #tpu.dot_dimension_numbers<[1], [0], [0], [1], [0, 0, 1, 1], [], []>} : vector<8x512xbf16>, vector<512x128xbf16>, vector<8x128xf32> -> vector<8x128xf32>
    %170 = arith.addf %133, %169 : vector<8x128xf32>
    %c0_63 = arith.constant 0 : index
    %c0_64 = arith.constant 0 : index
    %171 = vector.load %arg13[%c0_63, %c0_64] : memref<8x128xf32, #tpu.memory_space<vmem>>, vector<8x128xf32>
    tpu.vector_store %arg13[%c0_63, %c0_64], %170 {strides = array<i32>} : memref<8x128xf32, #tpu.memory_space<vmem>>, vector<8x128xf32>,
    %c1_i32 = arith.constant 1 : i32
    %172 = arith.cmpi eq, %arg1, %c1_i32 : i32
    %173 = arith.extui %172 : i1 to i32
    %c0_i32_65 = arith.constant 0 : i32
    %174 = arith.cmpi ne, %173, %c0_i32_65 : i32
    scf.if %174 {
      %175 = vector.extract_strided_slice %170 {offsets = [0, 0], sizes = [1, 128], strides = [1, 1]} : vector<8x128xf32> to vector<1x128xf32>
      %c0_66 = arith.constant 0 : index
      %c0_67 = arith.constant 0 : index
      %176 = vector.load %arg9[%c0_66, %c0_67] : memref<1x128xf32, #tpu.memory_space<vmem>>, vector<1x128xf32>
      %cst_68 = arith.constant dense<0.000000e+00> : vector<1xf32>
      %177 = vector.multi_reduction <add>, %175, %cst_68 [1] : vector<1x128xf32> to vector<1xf32>
      %178 = vector.shape_cast %177 : vector<1xf32> to vector<1x1xf32>
      %cst_69 = arith.constant 1.280000e+02 : f32
      %179 = vector.broadcast %cst_69 : f32 to vector<1x1xf32>
      %180 = arith.divf %178, %179 : vector<1x1xf32>
      %181 = vector.broadcast %180 : vector<1x1xf32> to vector<1x128xf32>
      %182 = arith.subf %175, %181 : vector<1x128xf32>
      %183 = arith.mulf %182, %182 : vector<1x128xf32>
      %cst_70 = arith.constant dense<0.000000e+00> : vector<1xf32>
      %184 = vector.multi_reduction <add>, %183, %cst_70 [1] : vector<1x128xf32> to vector<1xf32>
      %185 = vector.shape_cast %184 : vector<1xf32> to vector<1x1xf32>
      %cst_71 = arith.constant 1.280000e+02 : f32
      %186 = vector.broadcast %cst_71 : f32 to vector<1x1xf32>
      %187 = arith.divf %185, %186 : vector<1x1xf32>
      %cst_72 = arith.constant 9.99999974E-6 : f32
      %188 = vector.broadcast %cst_72 : f32 to vector<1x1xf32>
      %189 = arith.addf %187, %188 : vector<1x1xf32>
      %190 = math.rsqrt %189 : vector<1x1xf32>
      %191 = vector.broadcast %190 : vector<1x1xf32> to vector<1x128xf32>
      %192 = arith.mulf %182, %191 : vector<1x128xf32>
      %193 = arith.mulf %192, %176 : vector<1x128xf32>
      %194 = arith.truncf %193 : vector<1x128xf32> to vector<1x128xbf16>
      %c0_73 = arith.constant 0 : index
      %c0_74 = arith.constant 0 : index
      %195 = vector.load %arg10[%c0_73, %c0_74] : memref<128x128xbf16, #tpu.memory_space<vmem>>, vector<128x128xbf16>
      %cst_75 = arith.constant dense<0.000000e+00> : vector<1x128xf32>
      %196 = tpu.matmul %194, %195, %cst_75 {dimension_numbers = #tpu.dot_dimension_numbers<[1], [0], [0], [1], [0, 0, 1, 1], [], []>} : vector<1x128xbf16>, vector<128x128xbf16>, vector<1x128xf32> -> vector<1x128xf32>
      %c0_76 = arith.constant 0 : index
      %c0_77 = arith.constant 0 : index
      %197 = vector.load %arg11[%c0_76, %c0_77] : memref<1x128xf32, #tpu.memory_space<vmem>>, vector<1x128xf32>
      %198 = arith.addf %196, %197 : vector<1x128xf32>
      %c0_78 = arith.constant 0 : index
      %c0_79 = arith.constant 0 : index
      %c0_80 = arith.constant 0 : index
      %199 = vector.load %arg12[%c0_78, %c0_79, %c0_80] : memref<1x1x128xf32, #tpu.memory_space<vmem>>, vector<1x1x128xf32>
      %200 = vector.shape_cast %199 : vector<1x1x128xf32> to vector<1x128xf32>
      %201 = vector.shape_cast %198 : vector<1x128xf32> to vector<1x1x128xf32>
      tpu.vector_store %arg12[%c0_78, %c0_79, %c0_80], %201 {strides = array<i32>} : memref<1x1x128xf32, #tpu.memory_space<vmem>>, vector<1x1x128xf32>,
    } else {
    }
    return
  }
  func.func @transform_0(%arg0: i32, %arg1: i32) -> (i32, i32, i32) {
    %c0_i32 = arith.constant 0 : i32
    %c0_i32_0 = arith.constant 0 : i32
    %c0_i32_1 = arith.constant 0 : i32
    return %arg0, %c0_i32, %c0_i32_0 : i32, i32, i32
  }
  func.func @transform_1(%arg0: i32, %arg1: i32) -> (i32, i32, i32) {
    %c0_i32 = arith.constant 0 : i32
    %c0_i32_0 = arith.constant 0 : i32
    %c0_i32_1 = arith.constant 0 : i32
    return %arg1, %c0_i32, %c0_i32_0 : i32, i32, i32
  }
  func.func @transform_2(%arg0: i32, %arg1: i32) -> (i32, i32, i32) {
    %c0_i32 = arith.constant 0 : i32
    %c0_i32_0 = arith.constant 0 : i32
    %c0_i32_1 = arith.constant 0 : i32
    return %arg1, %c0_i32, %c0_i32_0 : i32, i32, i32
  }
  func.func @transform_3(%arg0: i32, %arg1: i32) -> (i32, i32, i32) {
    %c0_i32 = arith.constant 0 : i32
    %c0_i32_0 = arith.constant 0 : i32
    %c0_i32_1 = arith.constant 0 : i32
    return %arg1, %c0_i32, %c0_i32_0 : i32, i32, i32
  }
  func.func @transform_4(%arg0: i32, %arg1: i32) -> (i32, i32, i32) {
    %c0_i32 = arith.constant 0 : i32
    %c0_i32_0 = arith.constant 0 : i32
    %c0_i32_1 = arith.constant 0 : i32
    return %arg1, %c0_i32, %c0_i32_0 : i32, i32, i32
  }
  func.func @transform_5(%arg0: i32, %arg1: i32) -> (i32, i32, i32) {
    %c0_i32 = arith.constant 0 : i32
    %c0_i32_0 = arith.constant 0 : i32
    %c0_i32_1 = arith.constant 0 : i32
    return %arg1, %c0_i32, %c0_i32_0 : i32, i32, i32
  }
  func.func @transform_6(%arg0: i32, %arg1: i32) -> (i32, i32, i32) {
    %c0_i32 = arith.constant 0 : i32
    %c0_i32_0 = arith.constant 0 : i32
    %c0_i32_1 = arith.constant 0 : i32
    return %arg1, %c0_i32, %c0_i32_0 : i32, i32, i32
  }
  func.func @transform_7(%arg0: i32, %arg1: i32) -> (i32, i32) {
    %c0_i32 = arith.constant 0 : i32
    %c0_i32_0 = arith.constant 0 : i32
    %c0_i32_1 = arith.constant 0 : i32
    return %c0_i32, %c0_i32_0 : i32, i32
  }
  func.func @transform_8(%arg0: i32, %arg1: i32) -> (i32, i32) {
    %c0_i32 = arith.constant 0 : i32
    %c0_i32_0 = arith.constant 0 : i32
    %c0_i32_1 = arith.constant 0 : i32
    return %c0_i32, %c0_i32_0 : i32, i32
  }
  func.func @transform_9(%arg0: i32, %arg1: i32) -> (i32, i32) {
    %c0_i32 = arith.constant 0 : i32
    %c0_i32_0 = arith.constant 0 : i32
    %c0_i32_1 = arith.constant 0 : i32
    return %c0_i32, %c0_i32_0 : i32, i32
  }
  func.func @transform_10(%arg0: i32, %arg1: i32) -> (i32, i32, i32) {
    %c0_i32 = arith.constant 0 : i32
    %c0_i32_0 = arith.constant 0 : i32
    %c0_i32_1 = arith.constant 0 : i32
    return %arg0, %c0_i32, %c0_i32_0 : i32, i32, i32
  }
}

</mosaic_0001>

<llo_original>
// kernel: transformation_healer_forward.2
$region0: #{transformation_healer_forward.2}
  #allocation0 [shape = 'u32[]', space=smem, size = 0x4, offset = 0x4, fixed_abs, tag = 'smem constant byte address 0x4 - core index']
  #allocation1 [shape = 'u32[72,128]{1,0:T(1,128)}', space=vmem, size = 0x9000, scoped, tag = 'internal scratch']
  %s0 = inlined_call_operand.vmem [shape: f32[2,8,192], index: 0, kind: input, shape index: {}]
  %s1 = inlined_call_operand.hbm [shape: bf16[192,128], index: 1, kind: input, shape index: {}]
  %s2 = inlined_call_operand.vmem [shape: f32[8,128], index: 2, kind: input, shape index: {}]
  %s3 = inlined_call_operand.vmem [shape: f32[2,8,128], index: 3, kind: output, shape index: {}]
  %s4 = sld [smem:[#allocation0]]
  $region49: #{transformation_healer_forward.2} parent=0
    _
  %s6 = ssub.s32 1, %s4
  %s7 = scalar_select 0, %s6, %s4
  $region1: #{transformation_healer_forward.2} parent=0
    #allocation2 [shape = 'u8[49152]{0}', space=vmem, size = 0xc000, scoped, tag = 'input window, operand 1, single buffered']
    #allocation3 [shape = 's32[2]{0}', space=sflag, size = 0x8, scoped, tag = 'scoped memory for transformation_healer_forward.2']
    %8 = vsyncpa [#allocation3], 0
    loop: start=0, step=1, limit=4
    $region2: #{transformation_healer_forward.2} parent=1 // loop_pre_header
      _
    $region3: #{transformation_healer_forward.2} parent=1 // loop_header
      %s10 = sphi 0, %s14
      %p11 = scmp.ge.s32.totalorder %s10, 4
      %s20 = sphi 0, %s22
      %s23 = sphi 0, %s20
      %s24 = sphi 0, %s23
      %s40 = sphi 0, %s24
      %s44 = sphi 0, %s44
      %s46 = sphi 0, %s44
      %s47 = sphi 0, %s46
      %s61 = sphi 0, %s47
      %s65 = sphi 0, %s65
      %s67 = sphi 0, %s65
      %s68 = sphi 0, %s67
      %s82 = sphi 0, %s68
      %s88 = sphi 0, %s90
      %s91 = sphi 0, %s88
      %s92 = sphi 0, %s91
      %s108 = sphi 0, %s92
    $region4: #{transformation_healer_forward.2} parent=1 // loop_header_branch
      %13 = sbr.rel (%p11) target = $region8
    $region5: #{transformation_healer_forward.2} parent=1 // loop_body
      %s15 = ssub.s32 %s10, 1
      %s16 = ssub.s32 %s10, 2
      %s17 = sadd.s32 %s10, 1
      %s18 = ssub.s32 %s10, %s17
      %p19 = scmp.eq.s32.totalorder %s18, 0
      %s21 = sadd.s32 %s20, 1
      %s22 = scalar_select %p19, %s20, %s21
      %p25 = pneg %p19
      %p26 = scmp.eq.s32.totalorder %s10, 1
      %p27 = por %p25, %p26
      %p28 = scmp.ne.s32.totalorder %s20, %s23
      %p29 = scmp.eq.s32.totalorder %s10, 0
      %p30 = por %p28, %p29
      %p31 = scmp.ne.s32.totalorder %s20, %s23
      %p32 = scmp.eq.s32.totalorder %s15, 1
      %p33 = por %p31, %p32
      %p34 = scmp.ne.s32.totalorder %s23, %s24
      %p35 = scmp.eq.s32.totalorder %s15, 0
      %p36 = por %p34, %p35
      %p37 = scmp.ne.s32.totalorder %s23, %s24
      %p38 = scmp.eq.s32.totalorder %s16, 1
      %p39 = por %p37, %p38
      %p41 = scmp.ne.s32.totalorder %s24, %s40
      %p42 = scmp.eq.s32.totalorder %s16, 0
      %p43 = por %p41, %p42
      %s45 = sadd.s32 %s44, 1
      %p48 = scmp.eq.s32.totalorder %s10, 1
      %p49 = scmp.ne.s32.totalorder %s44, %s46
      %p50 = scmp.eq.s32.totalorder %s10, 0
      %p51 = por %p49, %p50
      %p52 = scmp.ne.s32.totalorder %s44, %s46
      %p53 = scmp.eq.s32.totalorder %s15, 1
      %p54 = por %p52, %p53
      %p55 = scmp.ne.s32.totalorder %s46, %s47
      %p56 = scmp.eq.s32.totalorder %s15, 0
      %p57 = por %p55, %p56
      %p58 = scmp.ne.s32.totalorder %s46, %s47
      %p59 = scmp.eq.s32.totalorder %s16, 1
      %p60 = por %p58, %p59
      %p62 = scmp.ne.s32.totalorder %s47, %s61
      %p63 = scmp.eq.s32.totalorder %s16, 0
      %p64 = por %p62, %p63
      %s66 = sadd.s32 %s65, 1
      %p69 = scmp.eq.s32.totalorder %s10, 1
      %p70 = scmp.ne.s32.totalorder %s65, %s67
      %p71 = scmp.eq.s32.totalorder %s10, 0
      %p72 = por %p70, %p71
      %p73 = scmp.ne.s32.totalorder %s65, %s67
      %p74 = scmp.eq.s32.totalorder %s15, 1
      %p75 = por %p73, %p74
      %p76 = scmp.ne.s32.totalorder %s67, %s68
      %p77 = scmp.eq.s32.totalorder %s15, 0
      %p78 = por %p76, %p77
      %p79 = scmp.ne.s32.totalorder %s67, %s68
      %p80 = scmp.eq.s32.totalorder %s16, 1
      %p81 = por %p79, %p80
      %p83 = scmp.ne.s32.totalorder %s68, %s82
      %p84 = scmp.eq.s32.totalorder %s16, 0
      %p85 = por %p83, %p84
      %s86 = ssub.s32 %s10, %s17
      %p87 = scmp.eq.s32.totalorder %s86, 0
      %s89 = sadd.s32 %s88, 1
      %s90 = scalar_select %p87, %s88, %s89
      %p93 = pneg %p87
      %p94 = scmp.eq.s32.totalorder %s10, 1
      %p95 = por %p93, %p94
      %p96 = scmp.ne.s32.totalorder %s88, %s91
      %p97 = scmp.eq.s32.totalorder %s10, 0
      %p98 = por %p96, %p97
      %p99 = scmp.ne.s32.totalorder %s88, %s91
      %p100 = scmp.eq.s32.totalorder %s15, 1
      %p101 = por %p99, %p100
      %p102 = scmp.ne.s32.totalorder %s91, %s92
      %p103 = scmp.eq.s32.totalorder %s15, 0
      %p104 = por %p102, %p103
      %p105 = scmp.ne.s32.totalorder %s91, %s92
      %p106 = scmp.eq.s32.totalorder %s16, 1
      %p107 = por %p105, %p106
      %p109 = scmp.ne.s32.totalorder %s92, %s108
      %p110 = scmp.eq.s32.totalorder %s16, 0
      %p111 = por %p109, %p110
      %p112 = scmp.le.s32.totalorder 1, %s10
      %p113 = scmp.lt.s32.totalorder %s10, 3
      %p114 = pnand %p112, %p113
      %p115 = pneg %p114
      // Predicated region
      $region9: #{transformation_healer_forward.2} parent=5 // pred_check
        _
      $region10: #{transformation_healer_forward.2} parent=5 // pred_check_branch
        %117 = sbr.rel (%p114) target = $region12
      $region11: #{transformation_healer_forward.2} parent=5 // pred_region
        %s118 = ssub.s32 %s10, 1
        // Predicated region
        $region13: #{transformation_healer_forward.2} parent=11 // pred_check
          %p119 = pneg %p57
        $region14: #{transformation_healer_forward.2} parent=11 // pred_check_branch
          %121 = sbr.rel (%p119) target = $region16
        $region15: #{transformation_healer_forward.2} parent=11 // pred_region
          %123 = vsyncadd [#allocation3], 0
          %s124 = sshll.u32 %s1, 4
          %s125 = int_to_ptr.hbm [resolvable:$true] %s124
          %s126 = sshll.u32 [#allocation2], 4
          %s127 = int_to_ptr.vmem [resolvable:$true] %s126
          %132 = dma.hbm_to_vmem [thread:$0]  %s125, 1536, %s127, [#allocation3], 64, 64, 4
        $region16: #{transformation_healer_forward.2} parent=11 // pred_fallthru
          _
        // Predicated region
        $region17: #{transformation_healer_forward.2} parent=11 // pred_check
          %p133 = pneg %p78
        $region18: #{transformation_healer_forward.2} parent=11 // pred_check_branch
          %135 = sbr.rel (%p133) target = $region20
        $region19: #{transformation_healer_forward.2} parent=11 // pred_region
          _
        $region20: #{transformation_healer_forward.2} parent=11 // pred_fallthru
          _
      $region12: #{transformation_healer_forward.2} parent=5 // pred_fallthru
        _
      %p136 = scmp.lt.s32.totalorder %s10, 2
      // Predicated region
      $region21: #{transformation_healer_forward.2} parent=5 // pred_check
        %p137 = pneg %p136
      $region22: #{transformation_healer_forward.2} parent=5 // pred_check_branch
        %139 = sbr.rel (%p137) target = $region24
      $region23: #{transformation_healer_forward.2} parent=5 // pred_region
        // Predicated region
        $region25: #{transformation_healer_forward.2} parent=23 // pred_check
          %p140 = pneg %p30
        $region26: #{transformation_healer_forward.2} parent=23 // pred_check_branch
          %142 = sbr.rel (%p140) target = $region28
        $region27: #{transformation_healer_forward.2} parent=23 // pred_region
          %p143 = scmp.lt.s32.totalorder %s10, 1
          %s144 = scalar_select %p143, %s10, 1
          %s145 = smul.addr %s144, 2
          %s146 = smul.addr %s145, 8
          %s147 = scalar_lea.vmem %s0, %s146
        $region28: #{transformation_healer_forward.2} parent=23 // pred_fallthru
          _
      $region24: #{transformation_healer_forward.2} parent=5 // pred_fallthru
        _
      %p148 = scmp.le.s32.totalorder 1, %s10
      %p149 = scmp.lt.s32.totalorder %s10, 3
      %p150 = pnand %p148, %p149
      %p151 = pneg %p150
      // Predicated region
      $region29: #{transformation_healer_forward.2} parent=5 // pred_check
        _
      $region30: #{transformation_healer_forward.2} parent=5 // pred_check_branch
        %153 = sbr.rel (%p150) target = $region32
      $region31: #{transformation_healer_forward.2} parent=5 // pred_region
        %s154 = ssub.s32 %s10, 1
        // Predicated region
        $region33: #{transformation_healer_forward.2} parent=31 // pred_check
          %p155 = pneg %p57
        $region34: #{transformation_healer_forward.2} parent=31 // pred_check_branch
          %157 = sbr.rel (%p155) target = $region36
        $region35: #{transformation_healer_forward.2} parent=31 // pred_region
          %159 = dma.done [#allocation3], 1536
        $region36: #{transformation_healer_forward.2} parent=31 // pred_fallthru
          _
        %p160 = scmp.lt.s32.totalorder %s15, 1
        %s161 = scalar_select %p160, %s15, 1
        %s162 = smul.addr %s161, 2
        %s163 = smul.addr %s162, 8
        %s164 = scalar_lea.vmem %s0, %s163
        %p165 = pneg %p36
        %p166 = pneg %p33
        %p167 = pneg %p57
        %p168 = pneg %p54
        %p169 = pneg %p78
        %p170 = pneg %p75
        %p171 = pneg %p104
        %p172 = pneg %p101
        %p173 = scmp.lt.s32.totalorder %s15, 1
        %s174 = scalar_select %p173, %s15, 1
        %s175 = smul.addr %s174, 8
        %s176 = scalar_lea.vmem %s3, %s175
        %p177 = scmp.lt.s32.totalorder %s15, 1
        %s178 = scalar_select %p177, %s15, 1
        %s179 = smul.addr %s178, 2
        %s180 = smul.addr %s179, 8
        %s181 = scalar_lea.vmem %s0, %s180
        %p182 = scmp.lt.s32.totalorder %s15, 1
        %s183 = scalar_select %p182, %s15, 1
        %s184 = smul.addr %s183, 8
        %s185 = scalar_lea.vmem %s3, %s184
        %v187 = vld [vmem:[%s181] sm:$0xff]
        %v188 = vld [vmem:[%s181 + $0x8] sm:$0xff]
        %v189 = vpack.c.bf16 %v187, %v187
        %v190 = vpack.c.bf16 %v188, %v188
        %v191 = vld [vmem:[#allocation2] sm:$0xf]
        %v192 = vld [vmem:[#allocation2 + $0x4] sm:$0xf]
        %v193 = vld [vmem:[#allocation2 + $0x8] sm:$0xf]
        %v194 = vld [vmem:[#allocation2 + $0xc] sm:$0xf]
        %v195 = vld [vmem:[#allocation2 + $0x10] sm:$0xf]
        %v196 = vld [vmem:[#allocation2 + $0x14] sm:$0xf]
        %v197 = vld [vmem:[#allocation2 + $0x18] sm:$0xf]
        %v198 = vld [vmem:[#allocation2 + $0x1c] sm:$0xf]
        %v199 = vld [vmem:[#allocation2 + $0x20] sm:$0xf]
        %v200 = vld [vmem:[#allocation2 + $0x24] sm:$0xf]
        %v201 = vld [vmem:[#allocation2 + $0x28] sm:$0xf]
        %v202 = vld [vmem:[#allocation2 + $0x2c] sm:$0xf]
        %v203 = vld [vmem:[#allocation2 + $0x30] sm:$0xf]
        %v204 = vld [vmem:[#allocation2 + $0x34] sm:$0xf]
        %v205 = vld [vmem:[#allocation2 + $0x38] sm:$0xf]
        %v206 = vld [vmem:[#allocation2 + $0x3c] sm:$0xf]
        %v207 = vld [vmem:[#allocation2 + $0x40] sm:$0xf]
        %v208 = vld [vmem:[#allocation2 + $0x44] sm:$0xf]
        %v209 = vld [vmem:[#allocation2 + $0x48] sm:$0xf]
        %v210 = vld [vmem:[#allocation2 + $0x4c] sm:$0xf]
        %v211 = vld [vmem:[#allocation2 + $0x50] sm:$0xf]
        %v212 = vld [vmem:[#allocation2 + $0x54] sm:$0xf]
        %v213 = vld [vmem:[#allocation2 + $0x58] sm:$0xf]
        %v214 = vld [vmem:[#allocation2 + $0x5c] sm:$0xf]
        %v215 = vld [vmem:[%s2] sm:$0xff]
        %v240 = vunpack.c.l.b16 %v191
        %v241 = vunpack.c.l.b16 %v192
        %v242 = vunpack.c.l.b16 %v193
        %v243 = vunpack.c.l.b16 %v194
        %v244 = vunpack.c.l.b16 %v195
        %v245 = vunpack.c.l.b16 %v196
        %v246 = vunpack.c.l.b16 %v197
        %v247 = vunpack.c.l.b16 %v198
        %v248 = vunpack.c.l.b16 %v199
        %v249 = vunpack.c.l.b16 %v200
        %v250 = vunpack.c.l.b16 %v201
        %v251 = vunpack.c.l.b16 %v202
        %v252 = vunpack.c.l.b16 %v203
        %v253 = vunpack.c.l.b16 %v204
        %v254 = vunpack.c.l.b16 %v205
        %v255 = vunpack.c.l.b16 %v206
        %v256 = vunpack.c.l.b16 %v207
        %v257 = vunpack.c.l.b16 %v208
        %v258 = vunpack.c.l.b16 %v209
        %v259 = vunpack.c.l.b16 %v210
        %v260 = vunpack.c.l.b16 %v211
        %v261 = vunpack.c.l.b16 %v212
        %v262 = vunpack.c.l.b16 %v213
        %v263 = vunpack.c.l.b16 %v214
        %v264 = vpack.c.b16 %v241, %v240
        %v265 = vpack.c.b16 %v243, %v242
        %v266 = vpack.c.b16 %v245, %v244
        %v267 = vpack.c.b16 %v247, %v246
        %v268 = vpack.c.b16 %v249, %v248
        %v269 = vpack.c.b16 %v251, %v250
        %v270 = vpack.c.b16 %v253, %v252
        %v271 = vpack.c.b16 %v255, %v254
        %v272 = vpack.c.b16 %v257, %v256
        %v273 = vpack.c.b16 %v259, %v258
        %v274 = vpack.c.b16 %v261, %v260
        %v275 = vpack.c.b16 %v263, %v262
        %vm288 = vcmask 523264
        %v290 = vsel %vm288, %v190, 0
        %292 = vmatpush.bf16.msra.mxu0 %v271
        %293 = vmatpush.bf16.msra.mxu0 %v270
        %294 = vmatpush.bf16.msra.mxu0 %v269
        %295 = vmatpush.bf16.msra.mxu0 %v268
        %296 = vmatpush.bf16.msra.mxu0 %v267
        %297 = vmatpush.bf16.msra.mxu0 %v266
        %298 = vmatpush.bf16.msra.mxu0 %v265
        %299 = vmatpush.bf16.msra.mxu0 %v264
        %300 = vmatmul.bf16.gmra.mxu0 %v189
        %v301 = vpop.f32.mrf.mxu0
        %v302 = vadd.f32 %v215, %v301
        %v303 = vpop.f32.mrf.mxu0
        %304 = vdwg.mxu0
        %305 = vmatpush.bf16.msra.mxu0 0
        %306 = vmatpush.bf16.msra.mxu0 0
        %307 = vmatpush.bf16.msra.mxu0 0
        %308 = vmatpush.bf16.msra.mxu0 0
        %309 = vmatpush.bf16.msra.mxu0 %v275
        %310 = vmatpush.bf16.msra.mxu0 %v274
        %311 = vmatpush.bf16.msra.mxu0 %v273
        %312 = vmatpush.bf16.msra.mxu0 %v272
        %313 = vmatmul.bf16.gmra.mxu0 %v290
        %v314 = vpop.f32.mrf.mxu0
        %v315 = vadd.f32 %v302, %v314
        %v316 = vpop.f32.mrf.mxu0
        %317 = vdwg.mxu0
        %318 = vst [vmem:[%s185] sm:$0xff] %v315
        %p319 = scmp.lt.s32.totalorder %s15, 1
        %s320 = scalar_select %p319, %s15, 1
        %s321 = smul.addr %s320, 8
        %s322 = scalar_lea.vmem %s3, %s321
        // Predicated region
        $region37: #{transformation_healer_forward.2} parent=31 // pred_check
          %p323 = pneg %p101
        $region38: #{transformation_healer_forward.2} parent=31 // pred_check_branch
          %325 = sbr.rel (%p323) target = $region40
        $region39: #{transformation_healer_forward.2} parent=31 // pred_region
          _
        $region40: #{transformation_healer_forward.2} parent=31 // pred_fallthru
          _
      $region32: #{transformation_healer_forward.2} parent=5 // pred_fallthru
        _
      %p326 = scmp.le.s32.totalorder 2, %s10
      // Predicated region
      $region41: #{transformation_healer_forward.2} parent=5 // pred_check
        %p327 = pneg %p326
      $region42: #{transformation_healer_forward.2} parent=5 // pred_check_branch
        %329 = sbr.rel (%p327) target = $region44
      $region43: #{transformation_healer_forward.2} parent=5 // pred_region
        %s330 = ssub.s32 %s10, 2
        // Predicated region
        $region45: #{transformation_healer_forward.2} parent=43 // pred_check
          %p331 = pneg %p107
        $region46: #{transformation_healer_forward.2} parent=43 // pred_check_branch
          %333 = sbr.rel (%p331) target = $region48
        $region47: #{transformation_healer_forward.2} parent=43 // pred_region
          %p334 = scmp.lt.s32.totalorder %s16, 1
          %s335 = scalar_select %p334, %s16, 1
          %s336 = smul.addr %s335, 8
          %s337 = scalar_lea.vmem %s3, %s336
        $region48: #{transformation_healer_forward.2} parent=43 // pred_fallthru
          _
      $region44: #{transformation_healer_forward.2} parent=5 // pred_fallthru
        _
    $region6: #{transformation_healer_forward.2} parent=1 // loop_footer
      %s14 = sadd.s32 1, %s10
    $region7: #{transformation_healer_forward.2} parent=1 // loop_footer_branch
      %9 = sbr.rel target = $region3
    $region8: #{transformation_healer_forward.2} parent=1 // loop_exit
      _
    %338 = vsyncpa [#allocation3], 1
    %s339 = scalar_lea.sflag [#allocation3], 1
    %340 = vsyncpa %s339, 1

// kernel: transformation_healer_forward.3
$region0: #{transformation_healer_forward.3}
  #allocation0 [shape = 'u32[]', space=smem, size = 0x4, offset = 0x4, fixed_abs, tag = 'smem constant byte address 0x4 - core index']
  #allocation1 [shape = 'u32[72,128]{1,0:T(1,128)}', space=vmem, size = 0x9000, scoped, tag = 'internal scratch']
  #allocation2 [shape = 'f32[8,128]{1,0:T(8,128)}', space=vmem, size = 0x1000, scoped, tag = 'scratch operand']
  %s0 = inlined_call_operand.vmem [shape: f32[2,8,128], index: 0, kind: input, shape index: {}]
  %s1 = inlined_call_operand.vmem [shape: f32[2,1,128], index: 1, kind: input, shape index: {}, may-alias: {1,4}]
  %s2 = inlined_call_operand.vmem [shape: bf16[2,128,384], index: 2, kind: input, shape index: {}]
  %s3 = inlined_call_operand.hbm [shape: bf16[2,128,128], index: 3, kind: input, shape index: {}]
  %s4 = inlined_call_operand.vmem [shape: f32[2,1,128], index: 4, kind: input, shape index: {}, may-alias: {1,4}]
  %s5 = inlined_call_operand.vmem [shape: bf16[2,128,512], index: 5, kind: input, shape index: {}]
  %s6 = inlined_call_operand.hbm [shape: bf16[2,512,128], index: 6, kind: input, shape index: {}]
  %s7 = inlined_call_operand.vmem [shape: f32[1,128], index: 7, kind: input, shape index: {}]
  %s8 = inlined_call_operand.hbm [shape: bf16[128,128], index: 8, kind: input, shape index: {}]
  %s9 = inlined_call_operand.vmem [shape: f32[1,128], index: 9, kind: input, shape index: {}]
  %s10 = inlined_call_operand.vmem [shape: f32[2,1,128], index: 10, kind: output, shape index: {}]
  %s11 = sld [smem:[#allocation0]]
  $region93: #{transformation_healer_forward.3} parent=0
    _
  %s13 = ssub.s32 1, %s11
  %s14 = scalar_select 0, %s13, %s11
  $region1: #{transformation_healer_forward.3} parent=0
    #allocation3 [shape = 'u8[65536]{0}', space=vmem, size = 0x10000, scoped, tag = 'input window, operand 3']
    #allocation4 [shape = 's32[2]{0}', space=sflag, size = 0x8, scoped, tag = 'scoped memory for transformation_healer_forward.3']
    #allocation5 [shape = 'u8[262144]{0}', space=vmem, size = 0x40000, scoped, tag = 'input window, operand 6']
    #allocation6 [shape = 's32[2]{0}', space=sflag, size = 0x8, scoped, tag = 'scoped memory for transformation_healer_forward.3']
    #allocation7 [shape = 'u8[32768]{0}', space=vmem, size = 0x8000, scoped, tag = 'input window, operand 8, single buffered']
    %15 = vsyncpa [#allocation4], 0
    %s16 = scalar_lea.sflag [#allocation4], 1
    %17 = vsyncpa %s16, 0
    %18 = vsyncpa [#allocation6], 0
    %s19 = scalar_lea.sflag [#allocation6], 1
    %20 = vsyncpa %s19, 0
    loop: start=0, step=1, limit=6
    $region2: #{transformation_healer_forward.3} parent=1 // loop_pre_header
      _
    $region3: #{transformation_healer_forward.3} parent=1 // loop_header
      %s22 = sphi 0, %s26
      %p23 = scmp.ge.s32.totalorder %s22, 6
      %s29 = sphi 0, %s41
      %s30 = sphi 0, %s37
      %s31 = sphi 0, %s29
      %s32 = sphi 0, %s30
      %s33 = sphi 0, %s31
      %s34 = sphi 0, %s32
      %s44 = sphi 0, %s46
      %s47 = sphi 0, %s44
      %s48 = sphi 0, %s47
      %s64 = sphi 0, %s48
      %s70 = sphi 0, %s72
      %s73 = sphi 0, %s70
      %s74 = sphi 0, %s73
      %s90 = sphi 0, %s74
      %s96 = sphi 0, %s98
      %s99 = sphi 0, %s96
      %s100 = sphi 0, %s99
      %s116 = sphi 0, %s100
      %s122 = sphi 0, %s124
      %s125 = sphi 0, %s122
      %s126 = sphi 0, %s125
      %s142 = sphi 0, %s126
      %s148 = sphi 0, %s150
      %s151 = sphi 0, %s148
      %s152 = sphi 0, %s151
      %s168 = sphi 0, %s152
      %s174 = sphi 0, %s176
      %s177 = sphi 0, %s174
      %s178 = sphi 0, %s177
      %s194 = sphi 0, %s178
      %s200 = sphi 0, %s202
      %s203 = sphi 0, %s200
      %s204 = sphi 0, %s203
      %s220 = sphi 0, %s204
      %s224 = sphi 0, %s224
      %s226 = sphi 0, %s224
      %s227 = sphi 0, %s226
      %s241 = sphi 0, %s227
      %s245 = sphi 0, %s245
      %s247 = sphi 0, %s245
      %s248 = sphi 0, %s247
      %s262 = sphi 0, %s248
      %s266 = sphi 0, %s266
      %s268 = sphi 0, %s266
      %s269 = sphi 0, %s268
      %s283 = sphi 0, %s269
      %s289 = sphi 0, %s291
      %s292 = sphi 0, %s289
      %s293 = sphi 0, %s292
      %s309 = sphi 0, %s293
    $region4: #{transformation_healer_forward.3} parent=1 // loop_header_branch
      %25 = sbr.rel (%p23) target = $region8
    $region5: #{transformation_healer_forward.3} parent=1 // loop_body
      %s27 = ssub.s32 %s22, 1
      %s28 = ssub.s32 %s22, 2
      %s35 = sadd.s32 1, %s30
      %p36 = scmp.ge.s32.totalorder %s35, 2
      %s37 = scalar_select %p36, 0, %s35
      %s38 = sadd.s32 1, %s29
      %s39 = scalar_select %p36, %s38, %s29
      %p40 = scmp.ge.s32.totalorder %s39, 2
      %s41 = scalar_select %p40, 0, %s39
      %s42 = ssub.s32 %s29, %s41
      %p43 = scmp.eq.s32.totalorder %s42, 0
      %s45 = sadd.s32 %s44, 1
      %s46 = scalar_select %p43, %s44, %s45
      %p49 = pneg %p43
      %p50 = scmp.eq.s32.totalorder %s22, 3
      %p51 = por %p49, %p50
      %p52 = scmp.ne.s32.totalorder %s44, %s47
      %p53 = scmp.eq.s32.totalorder %s22, 0
      %p54 = por %p52, %p53
      %p55 = scmp.ne.s32.totalorder %s44, %s47
      %p56 = scmp.eq.s32.totalorder %s27, 3
      %p57 = por %p55, %p56
      %p58 = scmp.ne.s32.totalorder %s47, %s48
      %p59 = scmp.eq.s32.totalorder %s27, 0
      %p60 = por %p58, %p59
      %p61 = scmp.ne.s32.totalorder %s47, %s48
      %p62 = scmp.eq.s32.totalorder %s28, 3
      %p63 = por %p61, %p62
      %p65 = scmp.ne.s32.totalorder %s48, %s64
      %p66 = scmp.eq.s32.totalorder %s28, 0
      %p67 = por %p65, %p66
      %s68 = ssub.s32 %s30, %s37
      %p69 = scmp.eq.s32.totalorder %s68, 0
      %s71 = sadd.s32 %s70, 1
      %s72 = scalar_select %p69, %s70, %s71
      %p75 = pneg %p69
      %p76 = scmp.eq.s32.totalorder %s22, 3
      %p77 = por %p75, %p76
      %p78 = scmp.ne.s32.totalorder %s70, %s73
      %p79 = scmp.eq.s32.totalorder %s22, 0
      %p80 = por %p78, %p79
      %p81 = scmp.ne.s32.totalorder %s70, %s73
      %p82 = scmp.eq.s32.totalorder %s27, 3
      %p83 = por %p81, %p82
      %p84 = scmp.ne.s32.totalorder %s73, %s74
      %p85 = scmp.eq.s32.totalorder %s27, 0
      %p86 = por %p84, %p85
      %p87 = scmp.ne.s32.totalorder %s73, %s74
      %p88 = scmp.eq.s32.totalorder %s28, 3
      %p89 = por %p87, %p88
      %p91 = scmp.ne.s32.totalorder %s74, %s90
      %p92 = scmp.eq.s32.totalorder %s28, 0
      %p93 = por %p91, %p92
      %s94 = ssub.s32 %s30, %s37
      %p95 = scmp.eq.s32.totalorder %s94, 0
      %s97 = sadd.s32 %s96, 1
      %s98 = scalar_select %p95, %s96, %s97
      %p101 = pneg %p95
      %p102 = scmp.eq.s32.totalorder %s22, 3
      %p103 = por %p101, %p102
      %p104 = scmp.ne.s32.totalorder %s96, %s99
      %p105 = scmp.eq.s32.totalorder %s22, 0
      %p106 = por %p104, %p105
      %p107 = scmp.ne.s32.totalorder %s96, %s99
      %p108 = scmp.eq.s32.totalorder %s27, 3
      %p109 = por %p107, %p108
      %p110 = scmp.ne.s32.totalorder %s99, %s100
      %p111 = scmp.eq.s32.totalorder %s27, 0
      %p112 = por %p110, %p111
      %p113 = scmp.ne.s32.totalorder %s99, %s100
      %p114 = scmp.eq.s32.totalorder %s28, 3
      %p115 = por %p113, %p114
      %p117 = scmp.ne.s32.totalorder %s100, %s116
      %p118 = scmp.eq.s32.totalorder %s28, 0
      %p119 = por %p117, %p118
      %s120 = ssub.s32 %s30, %s37
      %p121 = scmp.eq.s32.totalorder %s120, 0
      %s123 = sadd.s32 %s122, 1
      %s124 = scalar_select %p121, %s122, %s123
      %p127 = pneg %p121
      %p128 = scmp.eq.s32.totalorder %s22, 3
      %p129 = por %p127, %p128
      %p130 = scmp.ne.s32.totalorder %s122, %s125
      %p131 = scmp.eq.s32.totalorder %s22, 0
      %p132 = por %p130, %p131
      %p133 = scmp.ne.s32.totalorder %s122, %s125
      %p134 = scmp.eq.s32.totalorder %s27, 3
      %p135 = por %p133, %p134
      %p136 = scmp.ne.s32.totalorder %s125, %s126
      %p137 = scmp.eq.s32.totalorder %s27, 0
      %p138 = por %p136, %p137
      %p139 = scmp.ne.s32.totalorder %s125, %s126
      %p140 = scmp.eq.s32.totalorder %s28, 3
      %p141 = por %p139, %p140
      %p143 = scmp.ne.s32.totalorder %s126, %s142
      %p144 = scmp.eq.s32.totalorder %s28, 0
      %p145 = por %p143, %p144
      %s146 = ssub.s32 %s30, %s37
      %p147 = scmp.eq.s32.totalorder %s146, 0
      %s149 = sadd.s32 %s148, 1
      %s150 = scalar_select %p147, %s148, %s149
      %p153 = pneg %p147
      %p154 = scmp.eq.s32.totalorder %s22, 3
      %p155 = por %p153, %p154
      %p156 = scmp.ne.s32.totalorder %s148, %s151
      %p157 = scmp.eq.s32.totalorder %s22, 0
      %p158 = por %p156, %p157
      %p159 = scmp.ne.s32.totalorder %s148, %s151
      %p160 = scmp.eq.s32.totalorder %s27, 3
      %p161 = por %p159, %p160
      %p162 = scmp.ne.s32.totalorder %s151, %s152
      %p163 = scmp.eq.s32.totalorder %s27, 0
      %p164 = por %p162, %p163
      %p165 = scmp.ne.s32.totalorder %s151, %s152
      %p166 = scmp.eq.s32.totalorder %s28, 3
      %p167 = por %p165, %p166
      %p169 = scmp.ne.s32.totalorder %s152, %s168
      %p170 = scmp.eq.s32.totalorder %s28, 0
      %p171 = por %p169, %p170
      %s172 = ssub.s32 %s30, %s37
      %p173 = scmp.eq.s32.totalorder %s172, 0
      %s175 = sadd.s32 %s174, 1
      %s176 = scalar_select %p173, %s174, %s175
      %p179 = pneg %p173
      %p180 = scmp.eq.s32.totalorder %s22, 3
      %p181 = por %p179, %p180
      %p182 = scmp.ne.s32.totalorder %s174, %s177
      %p183 = scmp.eq.s32.totalorder %s22, 0
      %p184 = por %p182, %p183
      %p185 = scmp.ne.s32.totalorder %s174, %s177
      %p186 = scmp.eq.s32.totalorder %s27, 3
      %p187 = por %p185, %p186
      %p188 = scmp.ne.s32.totalorder %s177, %s178
      %p189 = scmp.eq.s32.totalorder %s27, 0
      %p190 = por %p188, %p189
      %p191 = scmp.ne.s32.totalorder %s177, %s178
      %p192 = scmp.eq.s32.totalorder %s28, 3
      %p193 = por %p191, %p192
      %p195 = scmp.ne.s32.totalorder %s178, %s194
      %p196 = scmp.eq.s32.totalorder %s28, 0
      %p197 = por %p195, %p196
      %s198 = ssub.s32 %s30, %s37
      %p199 = scmp.eq.s32.totalorder %s198, 0
      %s201 = sadd.s32 %s200, 1
      %s202 = scalar_select %p199, %s200, %s201
      %p205 = pneg %p199
      %p206 = scmp.eq.s32.totalorder %s22, 3
      %p207 = por %p205, %p206
      %p208 = scmp.ne.s32.totalorder %s200, %s203
      %p209 = scmp.eq.s32.totalorder %s22, 0
      %p210 = por %p208, %p209
      %p211 = scmp.ne.s32.totalorder %s200, %s203
      %p212 = scmp.eq.s32.totalorder %s27, 3
      %p213 = por %p211, %p212
      %p214 = scmp.ne.s32.totalorder %s203, %s204
      %p215 = scmp.eq.s32.totalorder %s27, 0
      %p216 = por %p214, %p215
      %p217 = scmp.ne.s32.totalorder %s203, %s204
      %p218 = scmp.eq.s32.totalorder %s28, 3
      %p219 = por %p217, %p218
      %p221 = scmp.ne.s32.totalorder %s204, %s220
      %p222 = scmp.eq.s32.totalorder %s28, 0
      %p223 = por %p221, %p222
      %s225 = sadd.s32 %s224, 1
      %p228 = scmp.eq.s32.totalorder %s22, 3
      %p229 = scmp.ne.s32.totalorder %s224, %s226
      %p230 = scmp.eq.s32.totalorder %s22, 0
      %p231 = por %p229, %p230
      %p232 = scmp.ne.s32.totalorder %s224, %s226
      %p233 = scmp.eq.s32.totalorder %s27, 3
      %p234 = por %p232, %p233
      %p235 = scmp.ne.s32.totalorder %s226, %s227
      %p236 = scmp.eq.s32.totalorder %s27, 0
      %p237 = por %p235, %p236
      %p238 = scmp.ne.s32.totalorder %s226, %s227
      %p239 = scmp.eq.s32.totalorder %s28, 3
      %p240 = por %p238, %p239
      %p242 = scmp.ne.s32.totalorder %s227, %s241
      %p243 = scmp.eq.s32.totalorder %s28, 0
      %p244 = por %p242, %p243
      %s246 = sadd.s32 %s245, 1
      %p249 = scmp.eq.s32.totalorder %s22, 3
      %p250 = scmp.ne.s32.totalorder %s245, %s247
      %p251 = scmp.eq.s32.totalorder %s22, 0
      %p252 = por %p250, %p251
      %p253 = scmp.ne.s32.totalorder %s245, %s247
      %p254 = scmp.eq.s32.totalorder %s27, 3
      %p255 = por %p253, %p254
      %p256 = scmp.ne.s32.totalorder %s247, %s248
      %p257 = scmp.eq.s32.totalorder %s27, 0
      %p258 = por %p256, %p257
      %p259 = scmp.ne.s32.totalorder %s247, %s248
      %p260 = scmp.eq.s32.totalorder %s28, 3
      %p261 = por %p259, %p260
      %p263 = scmp.ne.s32.totalorder %s248, %s262
      %p264 = scmp.eq.s32.totalorder %s28, 0
      %p265 = por %p263, %p264
      %s267 = sadd.s32 %s266, 1
      %p270 = scmp.eq.s32.totalorder %s22, 3
      %p271 = scmp.ne.s32.totalorder %s266, %s268
      %p272 = scmp.eq.s32.totalorder %s22, 0
      %p273 = por %p271, %p272
      %p274 = scmp.ne.s32.totalorder %s266, %s268
      %p275 = scmp.eq.s32.totalorder %s27, 3
      %p276 = por %p274, %p275
      %p277 = scmp.ne.s32.totalorder %s268, %s269
      %p278 = scmp.eq.s32.totalorder %s27, 0
      %p279 = por %p277, %p278
      %p280 = scmp.ne.s32.totalorder %s268, %s269
      %p281 = scmp.eq.s32.totalorder %s28, 3
      %p282 = por %p280, %p281
      %p284 = scmp.ne.s32.totalorder %s269, %s283
      %p285 = scmp.eq.s32.totalorder %s28, 0
      %p286 = por %p284, %p285
      %s287 = ssub.s32 %s29, %s41
      %p288 = scmp.eq.s32.totalorder %s287, 0
      %s290 = sadd.s32 %s289, 1
      %s291 = scalar_select %p288, %s289, %s290
      %p294 = pneg %p288
      %p295 = scmp.eq.s32.totalorder %s22, 3
      %p296 = por %p294, %p295
      %p297 = scmp.ne.s32.totalorder %s289, %s292
      %p298 = scmp.eq.s32.totalorder %s22, 0
      %p299 = por %p297, %p298
      %p300 = scmp.ne.s32.totalorder %s289, %s292
      %p301 = scmp.eq.s32.totalorder %s27, 3
      %p302 = por %p300, %p301
      %p303 = scmp.ne.s32.totalorder %s292, %s293
      %p304 = scmp.eq.s32.totalorder %s27, 0
      %p305 = por %p303, %p304
      %p306 = scmp.ne.s32.totalorder %s292, %s293
      %p307 = scmp.eq.s32.totalorder %s28, 3
      %p308 = por %p306, %p307
      %p310 = scmp.ne.s32.totalorder %s293, %s309
      %p311 = scmp.eq.s32.totalorder %s28, 0
      %p312 = por %p310, %p311
      %p313 = scmp.le.s32.totalorder 1, %s22
      %p314 = scmp.lt.s32.totalorder %s22, 5
      %p315 = pnand %p313, %p314
      %p316 = pneg %p315
      // Predicated region
      $region9: #{transformation_healer_forward.3} parent=5 // pred_check
        _
      $region10: #{transformation_healer_forward.3} parent=5 // pred_check_branch
        %318 = sbr.rel (%p315) target = $region12
      $region11: #{transformation_healer_forward.3} parent=5 // pred_region
        %s319 = ssub.s32 %s22, 1
        // Predicated region
        $region13: #{transformation_healer_forward.3} parent=11 // pred_check
          %p320 = pneg %p237
        $region14: #{transformation_healer_forward.3} parent=11 // pred_check_branch
          %322 = sbr.rel (%p320) target = $region16
        $region15: #{transformation_healer_forward.3} parent=11 // pred_region
          _
        $region16: #{transformation_healer_forward.3} parent=11 // pred_fallthru
          _
        // Predicated region
        $region17: #{transformation_healer_forward.3} parent=11 // pred_check
          %p323 = pneg %p258
        $region18: #{transformation_healer_forward.3} parent=11 // pred_check_branch
          %325 = sbr.rel (%p323) target = $region20
        $region19: #{transformation_healer_forward.3} parent=11 // pred_region
          %327 = vsyncadd [#allocation6], 0
          %s328 = sshll.u32 %s8, 4
          %s329 = int_to_ptr.hbm [resolvable:$true] %s328
          %s330 = sshll.u32 [#allocation7], 4
          %s331 = int_to_ptr.vmem [resolvable:$true] %s330
          %336 = dma.hbm_to_vmem [thread:$0]  %s329, 1024, %s331, [#allocation6], 64, 64, 4
        $region20: #{transformation_healer_forward.3} parent=11 // pred_fallthru
          _
        // Predicated region
        $region21: #{transformation_healer_forward.3} parent=11 // pred_check
          %p337 = pneg %p279
        $region22: #{transformation_healer_forward.3} parent=11 // pred_check_branch
          %339 = sbr.rel (%p337) target = $region24
        $region23: #{transformation_healer_forward.3} parent=11 // pred_region
          _
        $region24: #{transformation_healer_forward.3} parent=11 // pred_fallthru
          _
      $region12: #{transformation_healer_forward.3} parent=5 // pred_fallthru
        _
      %p340 = scmp.lt.s32.totalorder %s22, 4
      // Predicated region
      $region25: #{transformation_healer_forward.3} parent=5 // pred_check
        %p341 = pneg %p340
      $region26: #{transformation_healer_forward.3} parent=5 // pred_check_branch
        %343 = sbr.rel (%p341) target = $region28
      $region27: #{transformation_healer_forward.3} parent=5 // pred_region
        // Predicated region
        $region29: #{transformation_healer_forward.3} parent=27 // pred_check
          %p344 = pneg %p54
        $region30: #{transformation_healer_forward.3} parent=27 // pred_check_branch
          %346 = sbr.rel (%p344) target = $region32
        $region31: #{transformation_healer_forward.3} parent=27 // pred_region
          %p347 = scmp.lt.s32.totalorder %s29, 1
          %s348 = scalar_select %p347, %s29, 1
          %s349 = smul.addr %s348, 8
          %s350 = scalar_lea.vmem %s0, %s349
        $region32: #{transformation_healer_forward.3} parent=27 // pred_fallthru
          _
        // Predicated region
        $region33: #{transformation_healer_forward.3} parent=27 // pred_check
          %p351 = pneg %p80
        $region34: #{transformation_healer_forward.3} parent=27 // pred_check_branch
          %353 = sbr.rel (%p351) target = $region36
        $region35: #{transformation_healer_forward.3} parent=27 // pred_region
          %p354 = scmp.lt.s32.totalorder %s30, 1
          %s355 = scalar_select %p354, %s30, 1
          %s356 = scalar_lea.vmem %s1, %s355
        $region36: #{transformation_healer_forward.3} parent=27 // pred_fallthru
          _
        // Predicated region
        $region37: #{transformation_healer_forward.3} parent=27 // pred_check
          %p357 = pneg %p106
        $region38: #{transformation_healer_forward.3} parent=27 // pred_check_branch
          %359 = sbr.rel (%p357) target = $region40
        $region39: #{transformation_healer_forward.3} parent=27 // pred_region
          %p360 = scmp.lt.s32.totalorder %s30, 1
          %s361 = scalar_select %p360, %s30, 1
          %s362 = smul.addr %s361, 48
          %s363 = smul.addr %s362, 4
          %s364 = scalar_lea.vmem %s2, %s363
        $region40: #{transformation_healer_forward.3} parent=27 // pred_fallthru
          _
        // Predicated region
        $region41: #{transformation_healer_forward.3} parent=27 // pred_check
          %p365 = pneg %p132
        $region42: #{transformation_healer_forward.3} parent=27 // pred_check_branch
          %367 = sbr.rel (%p365) target = $region44
        $region43: #{transformation_healer_forward.3} parent=27 // pred_region
          %s368 = sand.u32 %s122, 1
          %s369 = scalar_lea.sflag [#allocation4], %s368
          %s370 = sand.u32 %s122, 1
          %s371 = smul.addr %s370, 64
          %s372 = scalar_lea.vmem [#allocation3], %s371
          %374 = vsyncadd %s369, 0
          %s375 = smul.addr %s30, 16
          %s376 = smul.addr %s375, 4
          %s377 = scalar_lea.hbm %s3, %s376
          %s378 = sshll.u32 %s377, 4
          %s379 = int_to_ptr.hbm [resolvable:$true] %s378
          %s380 = sshll.u32 %s372, 4
          %s381 = int_to_ptr.vmem [resolvable:$true] %s380
          %386 = dma.hbm_to_vmem [thread:$0]  %s379, 1024, %s381, %s369, 64, 64, 4
        $region44: #{transformation_healer_forward.3} parent=27 // pred_fallthru
          _
        // Predicated region
        $region45: #{transformation_healer_forward.3} parent=27 // pred_check
          %p387 = pneg %p158
        $region46: #{transformation_healer_forward.3} parent=27 // pred_check_branch
          %389 = sbr.rel (%p387) target = $region48
        $region47: #{transformation_healer_forward.3} parent=27 // pred_region
          %p390 = scmp.lt.s32.totalorder %s30, 1
          %s391 = scalar_select %p390, %s30, 1
          %s392 = scalar_lea.vmem %s4, %s391
        $region48: #{transformation_healer_forward.3} parent=27 // pred_fallthru
          _
        // Predicated region
        $region49: #{transformation_healer_forward.3} parent=27 // pred_check
          %p393 = pneg %p184
        $region50: #{transformation_healer_forward.3} parent=27 // pred_check_branch
          %395 = sbr.rel (%p393) target = $region52
        $region51: #{transformation_healer_forward.3} parent=27 // pred_region
          %p396 = scmp.lt.s32.totalorder %s30, 1
          %s397 = scalar_select %p396, %s30, 1
          %s398 = smul.addr %s397, 64
          %s399 = smul.addr %s398, 4
          %s400 = scalar_lea.vmem %s5, %s399
        $region52: #{transformation_healer_forward.3} parent=27 // pred_fallthru
          _
        // Predicated region
        $region53: #{transformation_healer_forward.3} parent=27 // pred_check
          %p401 = pneg %p210
        $region54: #{transformation_healer_forward.3} parent=27 // pred_check_branch
          %403 = sbr.rel (%p401) target = $region56
        $region55: #{transformation_healer_forward.3} parent=27 // pred_region
          %s404 = sand.u32 %s22, 1
          %s405 = scalar_lea.sflag [#allocation6], %s404
          %s406 = sand.u32 %s200, 1
          %s407 = smul.addr %s406, 256
          %s408 = scalar_lea.vmem [#allocation5], %s407
          %410 = vsyncadd %s405, 0
          %s411 = smul.addr %s30, 64
          %s412 = smul.addr %s411, 4
          %s413 = scalar_lea.hbm %s6, %s412
          %s414 = sshll.u32 %s413, 4
          %s415 = int_to_ptr.hbm [resolvable:$true] %s414
          %s416 = sshll.u32 %s408, 4
          %s417 = int_to_ptr.vmem [resolvable:$true] %s416
          %422 = dma.hbm_to_vmem [thread:$0]  %s415, 4096, %s417, %s405, 64, 64, 4
        $region56: #{transformation_healer_forward.3} parent=27 // pred_fallthru
          _
      $region28: #{transformation_healer_forward.3} parent=5 // pred_fallthru
        _
      %p423 = scmp.le.s32.totalorder 1, %s22
      %p424 = scmp.lt.s32.totalorder %s22, 5
      %p425 = pnand %p423, %p424
      %p426 = pneg %p425
      // Predicated region
      $region57: #{transformation_healer_forward.3} parent=5 // pred_check
        _
      $region58: #{transformation_healer_forward.3} parent=5 // pred_check_branch
        %428 = sbr.rel (%p425) target = $region60
      $region59: #{transformation_healer_forward.3} parent=5 // pred_region
        %s429 = ssub.s32 %s22, 1
        %s430 = sand.u32 %s125, 1
        %s431 = scalar_lea.sflag [#allocation4], %s430
        %s432 = sand.u32 %s125, 1
        %s433 = smul.addr %s432, 64
        %s434 = scalar_lea.vmem [#allocation3], %s433
        // Predicated region
        $region61: #{transformation_healer_forward.3} parent=59 // pred_check
          %p435 = pneg %p138
        $region62: #{transformation_healer_forward.3} parent=59 // pred_check_branch
          %437 = sbr.rel (%p435) target = $region64
        $region63: #{transformation_healer_forward.3} parent=59 // pred_region
          %439 = dma.done %s431, 1024
        $region64: #{transformation_healer_forward.3} parent=59 // pred_fallthru
          _
        %s440 = sand.u32 %s27, 1
        %s441 = scalar_lea.sflag [#allocation6], %s440
        %s442 = sand.u32 %s203, 1
        %s443 = smul.addr %s442, 256
        %s444 = scalar_lea.vmem [#allocation5], %s443
        // Predicated region
        $region65: #{transformation_healer_forward.3} parent=59 // pred_check
          %p445 = pneg %p216
        $region66: #{transformation_healer_forward.3} parent=59 // pred_check_branch
          %447 = sbr.rel (%p445) target = $region68
        $region67: #{transformation_healer_forward.3} parent=59 // pred_region
          %449 = dma.done %s441, 4096
        $region68: #{transformation_healer_forward.3} parent=59 // pred_fallthru
          _
        // Predicated region
        $region69: #{transformation_healer_forward.3} parent=59 // pred_check
          %p450 = pneg %p258
        $region70: #{transformation_healer_forward.3} parent=59 // pred_check_branch
          %452 = sbr.rel (%p450) target = $region72
        $region71: #{transformation_healer_forward.3} parent=59 // pred_region
          %454 = dma.done [#allocation6], 1024
        $region72: #{transformation_healer_forward.3} parent=59 // pred_fallthru
          _
        %p455 = scmp.lt.s32.totalorder %s31, 1
        %s456 = scalar_select %p455, %s31, 1
        %s457 = smul.addr %s456, 8
        %s458 = scalar_lea.vmem %s0, %s457
        %p459 = pneg %p60
        %p460 = pneg %p57
        %p461 = scmp.lt.s32.totalorder %s32, 1
        %s462 = scalar_select %p461, %s32, 1
        %s463 = scalar_lea.vmem %s1, %s462
        %p464 = pneg %p86
        %p465 = pneg %p83
        %p466 = scmp.lt.s32.totalorder %s32, 1
        %s467 = scalar_select %p466, %s32, 1
        %s468 = smul.addr %s467, 48
        %s469 = smul.addr %s468, 4
        %s470 = scalar_lea.vmem %s2, %s469
        %p471 = pneg %p112
        %p472 = pneg %p109
        %s473 = sand.u32 %s125, 1
        %s474 = scalar_lea.sflag [#allocation4], %s473
        %s475 = sand.u32 %s125, 1
        %s476 = smul.addr %s475, 64
        %s477 = scalar_lea.vmem [#allocation3], %s476
        %p478 = pneg %p138
        %p479 = pneg %p135
        %p480 = scmp.lt.s32.totalorder %s32, 1
        %s481 = scalar_select %p480, %s32, 1
        %s482 = scalar_lea.vmem %s4, %s481
        %p483 = pneg %p164
        %p484 = pneg %p161
        %p485 = scmp.lt.s32.totalorder %s32, 1
        %s486 = scalar_select %p485, %s32, 1
        %s487 = smul.addr %s486, 64
        %s488 = smul.addr %s487, 4
        %s489 = scalar_lea.vmem %s5, %s488
        %p490 = pneg %p190
        %p491 = pneg %p187
        %s492 = sand.u32 %s27, 1
        %s493 = scalar_lea.sflag [#allocation6], %s492
        %s494 = sand.u32 %s203, 1
        %s495 = smul.addr %s494, 256
        %s496 = scalar_lea.vmem [#allocation5], %s495
        %p497 = pneg %p216
        %p498 = pneg %p213
        %p499 = pneg %p237
        %p500 = pneg %p234
        %p501 = pneg %p258
        %p502 = pneg %p255
        %p503 = pneg %p279
        %p504 = pneg %p276
        %p505 = pneg %p305
        %p506 = pneg %p302
        %p507 = scmp.lt.s32.totalorder %s31, 1
        %s508 = scalar_select %p507, %s31, 1
        %s509 = scalar_lea.vmem %s10, %s508
        %p510 = scmp.lt.s32.totalorder %s31, 1
        %s511 = scalar_select %p510, %s31, 1
        %s512 = smul.addr %s511, 8
        %s513 = scalar_lea.vmem %s0, %s512
        %p514 = scmp.lt.s32.totalorder %s32, 1
        %s515 = scalar_select %p514, %s32, 1
        %s516 = scalar_lea.vmem %s1, %s515
        %p517 = scmp.lt.s32.totalorder %s32, 1
        %s518 = scalar_select %p517, %s32, 1
        %s519 = smul.addr %s518, 48
        %s520 = smul.addr %s519, 4
        %s521 = scalar_lea.vmem %s2, %s520
        %p522 = scmp.lt.s32.totalorder %s32, 1
        %s523 = scalar_select %p522, %s32, 1
        %s524 = scalar_lea.vmem %s4, %s523
        %p525 = scmp.lt.s32.totalorder %s32, 1
        %s526 = scalar_select %p525, %s32, 1
        %s527 = smul.addr %s526, 64
        %s528 = smul.addr %s527, 4
        %s529 = scalar_lea.vmem %s5, %s528
        %p530 = scmp.lt.s32.totalorder %s31, 1
        %s531 = scalar_select %p530, %s31, 1
        %s532 = scalar_lea.vmem %s10, %s531
        %p534 = scmp.eq.s32.totalorder %s32, 0
        // Predicated region
        $region73: #{transformation_healer_forward.3} parent=59 // pred_check
          %p535 = pneg %p534
        $region74: #{transformation_healer_forward.3} parent=59 // pred_check_branch
          %537 = sbr.rel (%p535) target = $region76
        $region75: #{transformation_healer_forward.3} parent=59 // pred_region
          %v538 = vld [vmem:[%s513] sm:$0xff]
          %539 = vst [vmem:[#allocation2] sm:$0xff] %v538
        $region76: #{transformation_healer_forward.3} parent=59 // pred_fallthru
          _
        %v540 = vld [vmem:[#allocation2] sm:$0xff]
        %v541 = vld [vmem:[%s516] sm:$0x1]
        %542 = vadd.xlane.f32.xlu0 %v540
        %v543 = vpop.xlane.xlu0 %542
        %v544 = vrcp.pop 128.0
        %v545 = vmul.f32 128.0, %v544
        %v546 = vsub.f32 1.0, %v545
        %v547 = vmul.f32 %v544, %v546
        %v548 = vadd.f32 %v544, %v547
        %vm549 = vweird.f32 %v544
        %v550 = vsel %vm549, %v544, %v548
        %v551 = vmul.f32 %v543, %v550
        %v552 = vsub.f32 %v540, %v551
        %v553 = vmul.f32 %v552, %v552
        %554 = vadd.xlane.f32.xlu0 %v553
        %v555 = vpop.xlane.xlu0 %554
        %v556 = vmul.f32 %v555, %v550
        %v557 = vadd.f32 %v556, 1e-05
        %v558 = vrsqrt.pop %v557
        %v559 = vmul.f32 %v558, %v557
        %v560 = vmul.f32 %v559, %v558
        %v561 = vmul.f32 0.5, %v560
        %v562 = vsub.f32 1.5, %v561
        %v563 = vmul.f32 %v558, %v562
        %vm564 = vweird.f32 %v557
        %vm565 = vweird.f32 %v558
        %vm566 = vmor %vm564, %vm565
        %v567 = vsel %vm566, %v558, %v563
        %v568 = vmul.f32 %v552, %v567
        %v570 = vperm.slane %v541, 0
        %v572 = vmul.f32 %v568, %v570
        %v573 = vpack.c.bf16 %v572, %v572
        %v574 = vld [vmem:[%s521] sm:$0xff]
        %v575 = vld [vmem:[%s521 + $0x8] sm:$0xf]
        %v576 = vld [vmem:[%s521 + $0xc] sm:$0xff]
        %v577 = vld [vmem:[%s521 + $0x14] sm:$0xf]
        %v578 = vld [vmem:[%s521 + $0x18] sm:$0xff]
        %v579 = vld [vmem:[%s521 + $0x20] sm:$0xf]
        %v580 = vld [vmem:[%s521 + $0x24] sm:$0xff]
        %v581 = vld [vmem:[%s521 + $0x2c] sm:$0xf]
        %v582 = vld [vmem:[%s521 + $0x30] sm:$0xff]
        %v583 = vld [vmem:[%s521 + $0x38] sm:$0xf]
        %v584 = vld [vmem:[%s521 + $0x3c] sm:$0xff]
        %v585 = vld [vmem:[%s521 + $0x44] sm:$0xf]
        %v586 = vld [vmem:[%s521 + $0x48] sm:$0xff]
        %v587 = vld [vmem:[%s521 + $0x50] sm:$0xf]
        %v588 = vld [vmem:[%s521 + $0x54] sm:$0xff]
        %v589 = vld [vmem:[%s521 + $0x5c] sm:$0xf]
        %v590 = vld [vmem:[%s521 + $0x60] sm:$0xff]
        %v591 = vld [vmem:[%s521 + $0x68] sm:$0xf]
        %v592 = vld [vmem:[%s521 + $0x6c] sm:$0xff]
        %v593 = vld [vmem:[%s521 + $0x74] sm:$0xf]
        %v594 = vld [vmem:[%s521 + $0x78] sm:$0xff]
        %v595 = vld [vmem:[%s521 + $0x80] sm:$0xf]
        %v596 = vld [vmem:[%s521 + $0x84] sm:$0xff]
        %v597 = vld [vmem:[%s521 + $0x8c] sm:$0xf]
        %v598 = vld [vmem:[%s521 + $0x90] sm:$0xff]
        %v599 = vld [vmem:[%s521 + $0x98] sm:$0xf]
        %v600 = vld [vmem:[%s521 + $0x9c] sm:$0xff]
        %v601 = vld [vmem:[%s521 + $0xa4] sm:$0xf]
        %v602 = vld [vmem:[%s521 + $0xa8] sm:$0xff]
        %v603 = vld [vmem:[%s521 + $0xb0] sm:$0xf]
        %v604 = vld [vmem:[%s521 + $0xb4] sm:$0xff]
        %v605 = vld [vmem:[%s521 + $0xbc] sm:$0xf]
        %v638 = vunpack.c.l.b16 %v574
        %v639 = vunpack.c.h.b16 %v574
        %v640 = vunpack.c.l.b16 %v575
        %v641 = vunpack.c.l.b16 %v576
        %v642 = vunpack.c.h.b16 %v576
        %v643 = vunpack.c.l.b16 %v577
        %v644 = vunpack.c.l.b16 %v578
        %v645 = vunpack.c.h.b16 %v578
        %v646 = vunpack.c.l.b16 %v579
        %v647 = vunpack.c.l.b16 %v580
        %v648 = vunpack.c.h.b16 %v580
        %v649 = vunpack.c.l.b16 %v581
        %v650 = vunpack.c.l.b16 %v582
        %v651 = vunpack.c.h.b16 %v582
        %v652 = vunpack.c.l.b16 %v583
        %v653 = vunpack.c.l.b16 %v584
        %v654 = vunpack.c.h.b16 %v584
        %v655 = vunpack.c.l.b16 %v585
        %v656 = vunpack.c.l.b16 %v586
        %v657 = vunpack.c.h.b16 %v586
        %v658 = vunpack.c.l.b16 %v587
        %v659 = vunpack.c.l.b16 %v588
        %v660 = vunpack.c.h.b16 %v588
        %v661 = vunpack.c.l.b16 %v589
        %v662 = vunpack.c.l.b16 %v590
        %v663 = vunpack.c.h.b16 %v590
        %v664 = vunpack.c.l.b16 %v591
        %v665 = vunpack.c.l.b16 %v592
        %v666 = vunpack.c.h.b16 %v592
        %v667 = vunpack.c.l.b16 %v593
        %v668 = vunpack.c.l.b16 %v594
        %v669 = vunpack.c.h.b16 %v594
        %v670 = vunpack.c.l.b16 %v595
        %v671 = vunpack.c.l.b16 %v596
        %v672 = vunpack.c.h.b16 %v596
        %v673 = vunpack.c.l.b16 %v597
        %v674 = vunpack.c.l.b16 %v598
        %v675 = vunpack.c.h.b16 %v598
        %v676 = vunpack.c.l.b16 %v599
        %v677 = vunpack.c.l.b16 %v600
        %v678 = vunpack.c.h.b16 %v600
        %v679 = vunpack.c.l.b16 %v601
        %v680 = vunpack.c.l.b16 %v602
        %v681 = vunpack.c.h.b16 %v602
        %v682 = vunpack.c.l.b16 %v603
        %v683 = vunpack.c.l.b16 %v604
        %v684 = vunpack.c.h.b16 %v604
        %v685 = vunpack.c.l.b16 %v605
        %v686 = vpack.c.b16 %v641, %v638
        %v687 = vpack.c.b16 %v642, %v639
        %v688 = vpack.c.b16 %v643, %v640
        %v689 = vpack.c.b16 %v647, %v644
        %v690 = vpack.c.b16 %v648, %v645
        %v691 = vpack.c.b16 %v649, %v646
        %v692 = vpack.c.b16 %v653, %v650
        %v693 = vpack.c.b16 %v654, %v651
        %v694 = vpack.c.b16 %v655, %v652
        %v695 = vpack.c.b16 %v659, %v656
        %v696 = vpack.c.b16 %v660, %v657
        %v697 = vpack.c.b16 %v661, %v658
        %v698 = vpack.c.b16 %v665, %v662
        %v699 = vpack.c.b16 %v666, %v663
        %v700 = vpack.c.b16 %v667, %v664
        %v701 = vpack.c.b16 %v671, %v668
        %v702 = vpack.c.b16 %v672, %v669
        %v703 = vpack.c.b16 %v673, %v670
        %v704 = vpack.c.b16 %v677, %v674
        %v705 = vpack.c.b16 %v678, %v675
        %v706 = vpack.c.b16 %v679, %v676
        %v707 = vpack.c.b16 %v683, %v680
        %v708 = vpack.c.b16 %v684, %v681
        %v709 = vpack.c.b16 %v685, %v682
        %734 = vmatpush.bf16.msra.mxu0 %v707
        %735 = vmatpush.bf16.msra.mxu0 %v704
        %736 = vmatpush.bf16.msra.mxu0 %v701
        %737 = vmatpush.bf16.msra.mxu0 %v698
        %738 = vmatpush.bf16.msra.mxu0 %v695
        %739 = vmatpush.bf16.msra.mxu0 %v692
        %740 = vmatpush.bf16.msra.mxu0 %v689
        %741 = vmatpush.bf16.msra.mxu0 %v686
        %742 = vmatmul.bf16.gmra.mxu0 %v573
        %v743 = vpop.f32.mrf.mxu0
        %v744 = vadd.f32 0.0, %v743
        %v745 = vpop.f32.mrf.mxu0
        %746 = vdwg.mxu0
        %747 = vmatpush.bf16.msra.mxu0 %v708
        %748 = vmatpush.bf16.msra.mxu0 %v705
        %749 = vmatpush.bf16.msra.mxu0 %v702
        %750 = vmatpush.bf16.msra.mxu0 %v699
        %751 = vmatpush.bf16.msra.mxu0 %v696
        %752 = vmatpush.bf16.msra.mxu0 %v693
        %753 = vmatpush.bf16.msra.mxu0 %v690
        %754 = vmatpush.bf16.msra.mxu0 %v687
        %755 = vmatmul.bf16.gmra.mxu0 %v573
        %v756 = vpop.f32.mrf.mxu0
        %v757 = vadd.f32 0.0, %v756
        %v758 = vpop.f32.mrf.mxu0
        %759 = vdwg.mxu0
        %760 = vmatpush.bf16.msra.mxu0 %v709
        %761 = vmatpush.bf16.msra.mxu0 %v706
        %762 = vmatpush.bf16.msra.mxu0 %v703
        %763 = vmatpush.bf16.msra.mxu0 %v700
        %764 = vmatpush.bf16.msra.mxu0 %v697
        %765 = vmatpush.bf16.msra.mxu0 %v694
        %766 = vmatpush.bf16.msra.mxu0 %v691
        %767 = vmatpush.bf16.msra.mxu0 %v688
        %768 = vmatmul.bf16.gmra.mxu0 %v573
        %v769 = vpop.f32.mrf.mxu0
        %v770 = vadd.f32 0.0, %v769
        %v771 = vpop.f32.mrf.mxu0
        %772 = vdwg.mxu0
        %v773 = vlaneseq
        %v774 = vand.u32 %v773, 127
        %vm775 = vcmp.lt.s32.totalorder %v774, 5
        %v776 = vsel %vm775, 0.0, -1e+30
        %v777 = vpack.c.bf16 %v744, %v744
        %v778 = vpack.c.bf16 %v757, %v757
        %v779 = vpack.c.bf16 %v770, %v770
        %vm780 = vcmask 261120
        %v782 = vsel %vm780, %v777, 0
        %v785 = vsel %vm780, %v778, 0
        %787 = vmatpush.bf16.xpose.msra.mxu0 0
        %788 = vmatpush.bf16.xpose.msra.mxu0 0
        %789 = vmatpush.bf16.xpose.msra.mxu0 0
        %790 = vmatpush.bf16.xpose.msra.mxu0 0
        %791 = vmatpush.bf16.xpose.msra.mxu0 0
        %792 = vmatpush.bf16.xpose.msra.mxu0 0
        %793 = vmatpush.bf16.xpose.msra.mxu0 0
        %794 = vmatpush.bf16.xpose.msra.mxu0 %v785
        %795 = vmatmul.bf16.gmra.mxu0 %v782
        %v796 = vpop.f32.mrf.mxu0
        %v797 = vadd.f32 %v776, %v796
        %v798 = vpop.f32.mrf.mxu0
        %799 = vdwg.mxu0
        %vm800 = vcmask 64512
        %v801 = vsel %vm800, %v797, -inf
        %802 = vmax.xlane.f32.xlu0 %v801
        %v803 = vpop.xlane.xlu0 %802
        %v804 = vsub.f32 %v797, %v803
        %v805 = vmul.f32 %v804, 1.442695
        %v806 = vpow.pop %v805
        %v807 = vsel %vm800, %v806, 0.0
        %808 = vadd.xlane.f32.xlu0 %v807
        %v809 = vpop.xlane.xlu0 %808
        %v810 = vrcp.pop %v809
        %v811 = vmul.f32 %v806, %v810
        %v812 = vpack.c.bf16 %v811, %v811
        %v814 = vsel %vm800, %v812, 0
        %vm816 = vcmask 1043456
        %v818 = vsel %vm816, %v779, 0
        %820 = vmatpush.bf16.msra.mxu0 0
        %821 = vmatpush.bf16.msra.mxu0 0
        %822 = vmatpush.bf16.msra.mxu0 0
        %823 = vmatpush.bf16.msra.mxu0 0
        %824 = vmatpush.bf16.msra.mxu0 0
        %825 = vmatpush.bf16.msra.mxu0 0
        %826 = vmatpush.bf16.msra.mxu0 0
        %827 = vmatpush.bf16.msra.mxu0 %v818
        %828 = vmatmul.bf16.gmra.mxu0 %v814
        %v829 = vpop.f32.mrf.mxu0
        %v830 = vadd.f32 0.0, %v829
        %v831 = vpop.f32.mrf.mxu0
        %832 = vdwg.mxu0
        %v833 = vpack.c.bf16 %v830, %v830
        %v834 = vld [vmem:[%s434] sm:$0xf]
        %v835 = vld [vmem:[%s434 + $0x4] sm:$0xf]
        %v836 = vld [vmem:[%s434 + $0x8] sm:$0xf]
        %v837 = vld [vmem:[%s434 + $0xc] sm:$0xf]
        %v842 = vunpack.c.l.b16 %v834
        %v843 = vunpack.c.l.b16 %v835
        %v844 = vunpack.c.l.b16 %v836
        %v845 = vunpack.c.l.b16 %v837
        %v846 = vpack.c.b16 %v843, %v842
        %v847 = vpack.c.b16 %v845, %v844
        %v851 = vsel %vm780, %v833, 0
        %853 = vmatpush.bf16.msra.mxu0 0
        %854 = vmatpush.bf16.msra.mxu0 0
        %855 = vmatpush.bf16.msra.mxu0 0
        %856 = vmatpush.bf16.msra.mxu0 0
        %857 = vmatpush.bf16.msra.mxu0 0
        %858 = vmatpush.bf16.msra.mxu0 0
        %859 = vmatpush.bf16.msra.mxu0 %v847
        %860 = vmatpush.bf16.msra.mxu0 %v846
        %861 = vmatmul.bf16.gmra.mxu0 %v851
        %v862 = vpop.f32.mrf.mxu0
        %v863 = vadd.f32 0.0, %v862
        %v864 = vpop.f32.mrf.mxu0
        %865 = vdwg.mxu0
        %v866 = vadd.f32 %v540, %v863
        %868 = vrot.lane.b32.xlu0 %v777, 96
        %v869 = vpop.permute.xlu0 %868
        %871 = vrot.lane.b32.xlu0 %v778, 96
        %v872 = vpop.permute.xlu0 %871
        %v874 = vsel %vm780, %v869, 0
        %v877 = vsel %vm780, %v872, 0
        %879 = vmatpush.bf16.xpose.msra.mxu0 0
        %880 = vmatpush.bf16.xpose.msra.mxu0 0
        %881 = vmatpush.bf16.xpose.msra.mxu0 0
        %882 = vmatpush.bf16.xpose.msra.mxu0 0
        %883 = vmatpush.bf16.xpose.msra.mxu0 0
        %884 = vmatpush.bf16.xpose.msra.mxu0 0
        %885 = vmatpush.bf16.xpose.msra.mxu0 0
        %886 = vmatpush.bf16.xpose.msra.mxu0 %v877
        %887 = vmatmul.bf16.gmra.mxu0 %v874
        %v888 = vpop.f32.mrf.mxu0
        %v889 = vadd.f32 %v776, %v888
        %v890 = vpop.f32.mrf.mxu0
        %891 = vdwg.mxu0
        %v892 = vsel %vm800, %v889, -inf
        %893 = vmax.xlane.f32.xlu0 %v892
        %v894 = vpop.xlane.xlu0 %893
        %v895 = vsub.f32 %v889, %v894
        %v896 = vmul.f32 %v895, 1.442695
        %v897 = vpow.pop %v896
        %v898 = vsel %vm800, %v897, 0.0
        %899 = vadd.xlane.f32.xlu0 %v898
        %v900 = vpop.xlane.xlu0 %899
        %v901 = vrcp.pop %v900
        %v902 = vmul.f32 %v897, %v901
        %v903 = vpack.c.bf16 %v902, %v902
        %905 = vrot.lane.b32.xlu0 %v779, 96
        %v906 = vpop.permute.xlu0 %905
        %v908 = vsel %vm800, %v903, 0
        %v911 = vsel %vm816, %v906, 0
        %913 = vmatpush.bf16.msra.mxu0 0
        %914 = vmatpush.bf16.msra.mxu0 0
        %915 = vmatpush.bf16.msra.mxu0 0
        %916 = vmatpush.bf16.msra.mxu0 0
        %917 = vmatpush.bf16.msra.mxu0 0
        %918 = vmatpush.bf16.msra.mxu0 0
        %919 = vmatpush.bf16.msra.mxu0 0
        %920 = vmatpush.bf16.msra.mxu0 %v911
        %921 = vmatmul.bf16.gmra.mxu0 %v908
        %v922 = vpop.f32.mrf.mxu0
        %v923 = vadd.f32 0.0, %v922
        %v924 = vpop.f32.mrf.mxu0
        %925 = vdwg.mxu0
        %v926 = vpack.c.bf16 %v923, %v923
        %v927 = vld [vmem:[%s434 + $0x10] sm:$0xf]
        %v928 = vld [vmem:[%s434 + $0x14] sm:$0xf]
        %v929 = vld [vmem:[%s434 + $0x18] sm:$0xf]
        %v930 = vld [vmem:[%s434 + $0x1c] sm:$0xf]
        %v935 = vunpack.c.l.b16 %v927
        %v936 = vunpack.c.l.b16 %v928
        %v937 = vunpack.c.l.b16 %v929
        %v938 = vunpack.c.l.b16 %v930
        %v939 = vpack.c.b16 %v936, %v935
        %v940 = vpack.c.b16 %v938, %v937
        %v944 = vsel %vm780, %v926, 0
        %946 = vmatpush.bf16.msra.mxu0 0
        %947 = vmatpush.bf16.msra.mxu0 0
        %948 = vmatpush.bf16.msra.mxu0 0
        %949 = vmatpush.bf16.msra.mxu0 0
        %950 = vmatpush.bf16.msra.mxu0 0
        %951 = vmatpush.bf16.msra.mxu0 0
        %952 = vmatpush.bf16.msra.mxu0 %v940
        %953 = vmatpush.bf16.msra.mxu0 %v939
        %954 = vmatmul.bf16.gmra.mxu0 %v944
        %v955 = vpop.f32.mrf.mxu0
        %v956 = vadd.f32 0.0, %v955
        %v957 = vpop.f32.mrf.mxu0
        %958 = vdwg.mxu0
        %v959 = vadd.f32 %v866, %v956
        %960 = vrot.lane.b32.xlu0 %v777, 64
        %v961 = vpop.permute.xlu0 %960
        %962 = vrot.lane.b32.xlu0 %v778, 64
        %v963 = vpop.permute.xlu0 %962
        %v965 = vsel %vm780, %v961, 0
        %v968 = vsel %vm780, %v963, 0
        %970 = vmatpush.bf16.xpose.msra.mxu0 0
        %971 = vmatpush.bf16.xpose.msra.mxu0 0
        %972 = vmatpush.bf16.xpose.msra.mxu0 0
        %973 = vmatpush.bf16.xpose.msra.mxu0 0
        %974 = vmatpush.bf16.xpose.msra.mxu0 0
        %975 = vmatpush.bf16.xpose.msra.mxu0 0
        %976 = vmatpush.bf16.xpose.msra.mxu0 0
        %977 = vmatpush.bf16.xpose.msra.mxu0 %v968
        %978 = vmatmul.bf16.gmra.mxu0 %v965
        %v979 = vpop.f32.mrf.mxu0
        %v980 = vadd.f32 %v776, %v979
        %v981 = vpop.f32.mrf.mxu0
        %982 = vdwg.mxu0
        %v983 = vsel %vm800, %v980, -inf
        %984 = vmax.xlane.f32.xlu0 %v983
        %v985 = vpop.xlane.xlu0 %984
        %v986 = vsub.f32 %v980, %v985
        %v987 = vmul.f32 %v986, 1.442695
        %v988 = vpow.pop %v987
        %v989 = vsel %vm800, %v988, 0.0
        %990 = vadd.xlane.f32.xlu0 %v989
        %v991 = vpop.xlane.xlu0 %990
        %v992 = vrcp.pop %v991
        %v993 = vmul.f32 %v988, %v992
        %v994 = vpack.c.bf16 %v993, %v993
        %995 = vrot.lane.b32.xlu0 %v779, 64
        %v996 = vpop.permute.xlu0 %995
        %v998 = vsel %vm800, %v994, 0
        %v1001 = vsel %vm816, %v996, 0
        %1003 = vmatpush.bf16.msra.mxu0 0
        %1004 = vmatpush.bf16.msra.mxu0 0
        %1005 = vmatpush.bf16.msra.mxu0 0
        %1006 = vmatpush.bf16.msra.mxu0 0
        %1007 = vmatpush.bf16.msra.mxu0 0
        %1008 = vmatpush.bf16.msra.mxu0 0
        %1009 = vmatpush.bf16.msra.mxu0 0
        %1010 = vmatpush.bf16.msra.mxu0 %v1001
        %1011 = vmatmul.bf16.gmra.mxu0 %v998
        %v1012 = vpop.f32.mrf.mxu0
        %v1013 = vadd.f32 0.0, %v1012
        %v1014 = vpop.f32.mrf.mxu0
        %1015 = vdwg.mxu0
        %v1016 = vpack.c.bf16 %v1013, %v1013
        %v1017 = vld [vmem:[%s434 + $0x20] sm:$0xf]
        %v1018 = vld [vmem:[%s434 + $0x24] sm:$0xf]
        %v1019 = vld [vmem:[%s434 + $0x28] sm:$0xf]
        %v1020 = vld [vmem:[%s434 + $0x2c] sm:$0xf]
        %v1025 = vunpack.c.l.b16 %v1017
        %v1026 = vunpack.c.l.b16 %v1018
        %v1027 = vunpack.c.l.b16 %v1019
        %v1028 = vunpack.c.l.b16 %v1020
        %v1029 = vpack.c.b16 %v1026, %v1025
        %v1030 = vpack.c.b16 %v1028, %v1027
        %v1034 = vsel %vm780, %v1016, 0
        %1036 = vmatpush.bf16.msra.mxu0 0
        %1037 = vmatpush.bf16.msra.mxu0 0
        %1038 = vmatpush.bf16.msra.mxu0 0
        %1039 = vmatpush.bf16.msra.mxu0 0
        %1040 = vmatpush.bf16.msra.mxu0 0
        %1041 = vmatpush.bf16.msra.mxu0 0
        %1042 = vmatpush.bf16.msra.mxu0 %v1030
        %1043 = vmatpush.bf16.msra.mxu0 %v1029
        %1044 = vmatmul.bf16.gmra.mxu0 %v1034
        %v1045 = vpop.f32.mrf.mxu0
        %v1046 = vadd.f32 0.0, %v1045
        %v1047 = vpop.f32.mrf.mxu0
        %1048 = vdwg.mxu0
        %v1049 = vadd.f32 %v959, %v1046
        %1050 = vrot.lane.b32.xlu0 %v777, 32
        %v1051 = vpop.permute.xlu0 %1050
        %1052 = vrot.lane.b32.xlu0 %v778, 32
        %v1053 = vpop.permute.xlu0 %1052
        %v1055 = vsel %vm780, %v1051, 0
        %v1058 = vsel %vm780, %v1053, 0
        %1060 = vmatpush.bf16.xpose.msra.mxu0 0
        %1061 = vmatpush.bf16.xpose.msra.mxu0 0
        %1062 = vmatpush.bf16.xpose.msra.mxu0 0
        %1063 = vmatpush.bf16.xpose.msra.mxu0 0
        %1064 = vmatpush.bf16.xpose.msra.mxu0 0
        %1065 = vmatpush.bf16.xpose.msra.mxu0 0
        %1066 = vmatpush.bf16.xpose.msra.mxu0 0
        %1067 = vmatpush.bf16.xpose.msra.mxu0 %v1058
        %1068 = vmatmul.bf16.gmra.mxu0 %v1055
        %v1069 = vpop.f32.mrf.mxu0
        %v1070 = vadd.f32 %v776, %v1069
        %v1071 = vpop.f32.mrf.mxu0
        %1072 = vdwg.mxu0
        %v1073 = vsel %vm800, %v1070, -inf
        %1074 = vmax.xlane.f32.xlu0 %v1073
        %v1075 = vpop.xlane.xlu0 %1074
        %v1076 = vsub.f32 %v1070, %v1075
        %v1077 = vmul.f32 %v1076, 1.442695
        %v1078 = vpow.pop %v1077
        %v1079 = vsel %vm800, %v1078, 0.0
        %1080 = vadd.xlane.f32.xlu0 %v1079
        %v1081 = vpop.xlane.xlu0 %1080
        %v1082 = vrcp.pop %v1081
        %v1083 = vmul.f32 %v1078, %v1082
        %v1084 = vpack.c.bf16 %v1083, %v1083
        %1085 = vrot.lane.b32.xlu0 %v779, 32
        %v1086 = vpop.permute.xlu0 %1085
        %v1088 = vsel %vm800, %v1084, 0
        %v1091 = vsel %vm816, %v1086, 0
        %1093 = vmatpush.bf16.msra.mxu0 0
        %1094 = vmatpush.bf16.msra.mxu0 0
        %1095 = vmatpush.bf16.msra.mxu0 0
        %1096 = vmatpush.bf16.msra.mxu0 0
        %1097 = vmatpush.bf16.msra.mxu0 0
        %1098 = vmatpush.bf16.msra.mxu0 0
        %1099 = vmatpush.bf16.msra.mxu0 0
        %1100 = vmatpush.bf16.msra.mxu0 %v1091
        %1101 = vmatmul.bf16.gmra.mxu0 %v1088
        %v1102 = vpop.f32.mrf.mxu0
        %v1103 = vadd.f32 0.0, %v1102
        %v1104 = vpop.f32.mrf.mxu0
        %1105 = vdwg.mxu0
        %v1106 = vpack.c.bf16 %v1103, %v1103
        %v1107 = vld [vmem:[%s434 + $0x30] sm:$0xf]
        %v1108 = vld [vmem:[%s434 + $0x34] sm:$0xf]
        %v1109 = vld [vmem:[%s434 + $0x38] sm:$0xf]
        %v1110 = vld [vmem:[%s434 + $0x3c] sm:$0xf]
        %v1115 = vunpack.c.l.b16 %v1107
        %v1116 = vunpack.c.l.b16 %v1108
        %v1117 = vunpack.c.l.b16 %v1109
        %v1118 = vunpack.c.l.b16 %v1110
        %v1119 = vpack.c.b16 %v1116, %v1115
        %v1120 = vpack.c.b16 %v1118, %v1117
        %v1124 = vsel %vm780, %v1106, 0
        %1126 = vmatpush.bf16.msra.mxu0 0
        %1127 = vmatpush.bf16.msra.mxu0 0
        %1128 = vmatpush.bf16.msra.mxu0 0
        %1129 = vmatpush.bf16.msra.mxu0 0
        %1130 = vmatpush.bf16.msra.mxu0 0
        %1131 = vmatpush.bf16.msra.mxu0 0
        %1132 = vmatpush.bf16.msra.mxu0 %v1120
        %1133 = vmatpush.bf16.msra.mxu0 %v1119
        %1134 = vmatmul.bf16.gmra.mxu0 %v1124
        %v1135 = vpop.f32.mrf.mxu0
        %v1136 = vadd.f32 0.0, %v1135
        %v1137 = vpop.f32.mrf.mxu0
        %1138 = vdwg.mxu0
        %v1139 = vadd.f32 %v1049, %v1136
        %v1140 = vld [vmem:[%s524] sm:$0x1]
        %1141 = vadd.xlane.f32.xlu0 %v1139
        %v1142 = vpop.xlane.xlu0 %1141
        %v1143 = vmul.f32 %v1142, %v550
        %v1144 = vsub.f32 %v1139, %v1143
        %v1145 = vmul.f32 %v1144, %v1144
        %1146 = vadd.xlane.f32.xlu0 %v1145
        %v1147 = vpop.xlane.xlu0 %1146
        %v1148 = vmul.f32 %v1147, %v550
        %v1149 = vadd.f32 %v1148, 1e-05
        %v1150 = vrsqrt.pop %v1149
        %v1151 = vmul.f32 %v1150, %v1149
        %v1152 = vmul.f32 %v1151, %v1150
        %v1153 = vmul.f32 0.5, %v1152
        %v1154 = vsub.f32 1.5, %v1153
        %v1155 = vmul.f32 %v1150, %v1154
        %vm1156 = vweird.f32 %v1149
        %vm1157 = vweird.f32 %v1150
        %vm1158 = vmor %vm1156, %vm1157
        %v1159 = vsel %vm1158, %v1150, %v1155
        %v1160 = vmul.f32 %v1144, %v1159
        %v1162 = vperm.slane %v1140, 0
        %v1164 = vmul.f32 %v1160, %v1162
        %v1165 = vpack.c.bf16 %v1164, %v1164
        %v1166 = vld [vmem:[%s529] sm:$0xff]
        %v1167 = vld [vmem:[%s529 + $0x8] sm:$0xff]
        %v1168 = vld [vmem:[%s529 + $0x10] sm:$0xff]
        %v1169 = vld [vmem:[%s529 + $0x18] sm:$0xff]
        %v1170 = vld [vmem:[%s529 + $0x20] sm:$0xff]
        %v1171 = vld [vmem:[%s529 + $0x28] sm:$0xff]
        %v1172 = vld [vmem:[%s529 + $0x30] sm:$0xff]
        %v1173 = vld [vmem:[%s529 + $0x38] sm:$0xff]
        %v1174 = vld [vmem:[%s529 + $0x40] sm:$0xff]
        %v1175 = vld [vmem:[%s529 + $0x48] sm:$0xff]
        %v1176 = vld [vmem:[%s529 + $0x50] sm:$0xff]
        %v1177 = vld [vmem:[%s529 + $0x58] sm:$0xff]
        %v1178 = vld [vmem:[%s529 + $0x60] sm:$0xff]
        %v1179 = vld [vmem:[%s529 + $0x68] sm:$0xff]
        %v1180 = vld [vmem:[%s529 + $0x70] sm:$0xff]
        %v1181 = vld [vmem:[%s529 + $0x78] sm:$0xff]
        %v1182 = vld [vmem:[%s529 + $0x80] sm:$0xff]
        %v1183 = vld [vmem:[%s529 + $0x88] sm:$0xff]
        %v1184 = vld [vmem:[%s529 + $0x90] sm:$0xff]
        %v1185 = vld [vmem:[%s529 + $0x98] sm:$0xff]
        %v1186 = vld [vmem:[%s529 + $0xa0] sm:$0xff]
        %v1187 = vld [vmem:[%s529 + $0xa8] sm:$0xff]
        %v1188 = vld [vmem:[%s529 + $0xb0] sm:$0xff]
        %v1189 = vld [vmem:[%s529 + $0xb8] sm:$0xff]
        %v1190 = vld [vmem:[%s529 + $0xc0] sm:$0xff]
        %v1191 = vld [vmem:[%s529 + $0xc8] sm:$0xff]
        %v1192 = vld [vmem:[%s529 + $0xd0] sm:$0xff]
        %v1193 = vld [vmem:[%s529 + $0xd8] sm:$0xff]
        %v1194 = vld [vmem:[%s529 + $0xe0] sm:$0xff]
        %v1195 = vld [vmem:[%s529 + $0xe8] sm:$0xff]
        %v1196 = vld [vmem:[%s529 + $0xf0] sm:$0xff]
        %v1197 = vld [vmem:[%s529 + $0xf8] sm:$0xff]
        %v1230 = vunpack.c.l.b16 %v1166
        %v1231 = vunpack.c.h.b16 %v1166
        %v1232 = vunpack.c.l.b16 %v1167
        %v1233 = vunpack.c.h.b16 %v1167
        %v1234 = vunpack.c.l.b16 %v1168
        %v1235 = vunpack.c.h.b16 %v1168
        %v1236 = vunpack.c.l.b16 %v1169
        %v1237 = vunpack.c.h.b16 %v1169
        %v1238 = vunpack.c.l.b16 %v1170
        %v1239 = vunpack.c.h.b16 %v1170
        %v1240 = vunpack.c.l.b16 %v1171
        %v1241 = vunpack.c.h.b16 %v1171
        %v1242 = vunpack.c.l.b16 %v1172
        %v1243 = vunpack.c.h.b16 %v1172
        %v1244 = vunpack.c.l.b16 %v1173
        %v1245 = vunpack.c.h.b16 %v1173
        %v1246 = vunpack.c.l.b16 %v1174
        %v1247 = vunpack.c.h.b16 %v1174
        %v1248 = vunpack.c.l.b16 %v1175
        %v1249 = vunpack.c.h.b16 %v1175
        %v1250 = vunpack.c.l.b16 %v1176
        %v1251 = vunpack.c.h.b16 %v1176
        %v1252 = vunpack.c.l.b16 %v1177
        %v1253 = vunpack.c.h.b16 %v1177
        %v1254 = vunpack.c.l.b16 %v1178
        %v1255 = vunpack.c.h.b16 %v1178
        %v1256 = vunpack.c.l.b16 %v1179
        %v1257 = vunpack.c.h.b16 %v1179
        %v1258 = vunpack.c.l.b16 %v1180
        %v1259 = vunpack.c.h.b16 %v1180
        %v1260 = vunpack.c.l.b16 %v1181
        %v1261 = vunpack.c.h.b16 %v1181
        %v1262 = vunpack.c.l.b16 %v1182
        %v1263 = vunpack.c.h.b16 %v1182
        %v1264 = vunpack.c.l.b16 %v1183
        %v1265 = vunpack.c.h.b16 %v1183
        %v1266 = vunpack.c.l.b16 %v1184
        %v1267 = vunpack.c.h.b16 %v1184
        %v1268 = vunpack.c.l.b16 %v1185
        %v1269 = vunpack.c.h.b16 %v1185
        %v1270 = vunpack.c.l.b16 %v1186
        %v1271 = vunpack.c.h.b16 %v1186
        %v1272 = vunpack.c.l.b16 %v1187
        %v1273 = vunpack.c.h.b16 %v1187
        %v1274 = vunpack.c.l.b16 %v1188
        %v1275 = vunpack.c.h.b16 %v1188
        %v1276 = vunpack.c.l.b16 %v1189
        %v1277 = vunpack.c.h.b16 %v1189
        %v1278 = vunpack.c.l.b16 %v1190
        %v1279 = vunpack.c.h.b16 %v1190
        %v1280 = vunpack.c.l.b16 %v1191
        %v1281 = vunpack.c.h.b16 %v1191
        %v1282 = vunpack.c.l.b16 %v1192
        %v1283 = vunpack.c.h.b16 %v1192
        %v1284 = vunpack.c.l.b16 %v1193
        %v1285 = vunpack.c.h.b16 %v1193
        %v1286 = vunpack.c.l.b16 %v1194
        %v1287 = vunpack.c.h.b16 %v1194
        %v1288 = vunpack.c.l.b16 %v1195
        %v1289 = vunpack.c.h.b16 %v1195
        %v1290 = vunpack.c.l.b16 %v1196
        %v1291 = vunpack.c.h.b16 %v1196
        %v1292 = vunpack.c.l.b16 %v1197
        %v1293 = vunpack.c.h.b16 %v1197
        %v1294 = vpack.c.b16 %v1234, %v1230
        %v1295 = vpack.c.b16 %v1235, %v1231
        %v1296 = vpack.c.b16 %v1236, %v1232
        %v1297 = vpack.c.b16 %v1237, %v1233
        %v1298 = vpack.c.b16 %v1242, %v1238
        %v1299 = vpack.c.b16 %v1243, %v1239
        %v1300 = vpack.c.b16 %v1244, %v1240
        %v1301 = vpack.c.b16 %v1245, %v1241
        %v1302 = vpack.c.b16 %v1250, %v1246
        %v1303 = vpack.c.b16 %v1251, %v1247
        %v1304 = vpack.c.b16 %v1252, %v1248
        %v1305 = vpack.c.b16 %v1253, %v1249
        %v1306 = vpack.c.b16 %v1258, %v1254
        %v1307 = vpack.c.b16 %v1259, %v1255
        %v1308 = vpack.c.b16 %v1260, %v1256
        %v1309 = vpack.c.b16 %v1261, %v1257
        %v1310 = vpack.c.b16 %v1266, %v1262
        %v1311 = vpack.c.b16 %v1267, %v1263
        %v1312 = vpack.c.b16 %v1268, %v1264
        %v1313 = vpack.c.b16 %v1269, %v1265
        %v1314 = vpack.c.b16 %v1274, %v1270
        %v1315 = vpack.c.b16 %v1275, %v1271
        %v1316 = vpack.c.b16 %v1276, %v1272
        %v1317 = vpack.c.b16 %v1277, %v1273
        %v1318 = vpack.c.b16 %v1282, %v1278
        %v1319 = vpack.c.b16 %v1283, %v1279
        %v1320 = vpack.c.b16 %v1284, %v1280
        %v1321 = vpack.c.b16 %v1285, %v1281
        %v1322 = vpack.c.b16 %v1290, %v1286
        %v1323 = vpack.c.b16 %v1291, %v1287
        %v1324 = vpack.c.b16 %v1292, %v1288
        %v1325 = vpack.c.b16 %v1293, %v1289
        %1358 = vmatpush.bf16.msra.mxu0 %v1322
        %1359 = vmatpush.bf16.msra.mxu0 %v1318
        %1360 = vmatpush.bf16.msra.mxu0 %v1314
        %1361 = vmatpush.bf16.msra.mxu0 %v1310
        %1362 = vmatpush.bf16.msra.mxu0 %v1306
        %1363 = vmatpush.bf16.msra.mxu0 %v1302
        %1364 = vmatpush.bf16.msra.mxu0 %v1298
        %1365 = vmatpush.bf16.msra.mxu0 %v1294
        %1366 = vmatmul.bf16.gmra.mxu0 %v1165
        %v1367 = vpop.f32.mrf.mxu0
        %v1368 = vadd.f32 0.0, %v1367
        %v1369 = vpop.f32.mrf.mxu0
        %1370 = vdwg.mxu0
        %1371 = vmatpush.bf16.msra.mxu0 %v1323
        %1372 = vmatpush.bf16.msra.mxu0 %v1319
        %1373 = vmatpush.bf16.msra.mxu0 %v1315
        %1374 = vmatpush.bf16.msra.mxu0 %v1311
        %1375 = vmatpush.bf16.msra.mxu0 %v1307
        %1376 = vmatpush.bf16.msra.mxu0 %v1303
        %1377 = vmatpush.bf16.msra.mxu0 %v1299
        %1378 = vmatpush.bf16.msra.mxu0 %v1295
        %1379 = vmatmul.bf16.gmra.mxu0 %v1165
        %v1380 = vpop.f32.mrf.mxu0
        %v1381 = vadd.f32 0.0, %v1380
        %v1382 = vpop.f32.mrf.mxu0
        %1383 = vdwg.mxu0
        %1384 = vmatpush.bf16.msra.mxu0 %v1324
        %1385 = vmatpush.bf16.msra.mxu0 %v1320
        %1386 = vmatpush.bf16.msra.mxu0 %v1316
        %1387 = vmatpush.bf16.msra.mxu0 %v1312
        %1388 = vmatpush.bf16.msra.mxu0 %v1308
        %1389 = vmatpush.bf16.msra.mxu0 %v1304
        %1390 = vmatpush.bf16.msra.mxu0 %v1300
        %1391 = vmatpush.bf16.msra.mxu0 %v1296
        %1392 = vmatmul.bf16.gmra.mxu0 %v1165
        %v1393 = vpop.f32.mrf.mxu0
        %v1394 = vadd.f32 0.0, %v1393
        %v1395 = vpop.f32.mrf.mxu0
        %1396 = vdwg.mxu0
        %1397 = vmatpush.bf16.msra.mxu0 %v1325
        %1398 = vmatpush.bf16.msra.mxu0 %v1321
        %1399 = vmatpush.bf16.msra.mxu0 %v1317
        %1400 = vmatpush.bf16.msra.mxu0 %v1313
        %1401 = vmatpush.bf16.msra.mxu0 %v1309
        %1402 = vmatpush.bf16.msra.mxu0 %v1305
        %1403 = vmatpush.bf16.msra.mxu0 %v1301
        %1404 = vmatpush.bf16.msra.mxu0 %v1297
        %1405 = vmatmul.bf16.gmra.mxu0 %v1165
        %v1406 = vpop.f32.mrf.mxu0
        %v1407 = vadd.f32 0.0, %v1406
        %v1408 = vpop.f32.mrf.mxu0
        %1409 = vdwg.mxu0
        %v1410 = vmul.f32 %v1368, 0.5
        %v1411 = vmul.f32 %v1381, 0.5
        %v1412 = vmul.f32 %v1394, 0.5
        %v1413 = vmul.f32 %v1407, 0.5
        %v1414 = vmul.f32 %v1368, 0.70710677
        %v1415 = vmul.f32 %v1381, 0.70710677
        %v1416 = vmul.f32 %v1394, 0.70710677
        %v1417 = vmul.f32 %v1407, 0.70710677
        %v1418 = vmul.f32 %v1414, %v1414
        %v1419 = vmin.f32 16.0, %v1418
        %v1420 = vmul.f32 %v1419, 2.1237322e-06
        %v1421 = vadd.f32 %v1420, 0.00028619796
        %v1422 = vmul.f32 %v1419, %v1421
        %v1423 = vadd.f32 %v1422, 0.0036580483
        %v1424 = vmul.f32 %v1419, %v1423
        %v1425 = vadd.f32 %v1424, 0.05243302
        %v1426 = vmul.f32 %v1419, %v1425
        %v1427 = vadd.f32 %v1426, 0.18741608
        %v1428 = vmul.f32 %v1419, %v1427
        %v1429 = vadd.f32 %v1428, 1.1283791
        %v1430 = vmul.f32 %v1414, %v1429
        %v1431 = vmul.f32 %v1419, 3.8918573e-05
        %v1432 = vadd.f32 %v1431, 0.001143296
        %v1433 = vmul.f32 %v1419, %v1432
        %v1434 = vadd.f32 %v1433, 0.014752088
        %v1435 = vmul.f32 %v1419, %v1434
        %v1436 = vadd.f32 %v1435, 0.112945676
        %v1437 = vmul.f32 %v1419, %v1436
        %v1438 = vadd.f32 %v1437, 0.4994258
        %v1439 = vmul.f32 %v1419, %v1438
        %v1440 = vadd.f32 %v1439, 1.0
        %v1441 = vrcp.pop %v1440
        %v1442 = vmul.f32 %v1440, %v1441
        %v1443 = vsub.f32 1.0, %v1442
        %v1444 = vmul.f32 %v1441, %v1443
        %v1445 = vadd.f32 %v1441, %v1444
        %vm1446 = vweird.f32 %v1440
        %vm1447 = vweird.f32 %v1441
        %vm1448 = vmor %vm1446, %vm1447
        %v1449 = vsel %vm1448, %v1441, %v1445
        %v1450 = vand.u32 2147483647, %v1440
        %vm1451 = vcmp.eq.f32.partialorder %v1450, 8.507059e+37
        %v1452 = vand.u32 %v1440, 2147483648
        %v1453 = vor.u32 1.1754944e-38, %v1452
        %v1454 = vsel %vm1451, %v1453, %v1449
        %v1455 = vmul.f32 %v1430, %v1454
        %v1456 = vmin.f32 %v1455, 1.0
        %v1457 = vmax.f32 %v1456, -1.0
        %v1458 = vmul.f32 %v1415, %v1415
        %v1459 = vmin.f32 16.0, %v1458
        %v1460 = vmul.f32 %v1459, 2.1237322e-06
        %v1461 = vadd.f32 %v1460, 0.00028619796
        %v1462 = vmul.f32 %v1459, %v1461
        %v1463 = vadd.f32 %v1462, 0.0036580483
        %v1464 = vmul.f32 %v1459, %v1463
        %v1465 = vadd.f32 %v1464, 0.05243302
        %v1466 = vmul.f32 %v1459, %v1465
        %v1467 = vadd.f32 %v1466, 0.18741608
        %v1468 = vmul.f32 %v1459, %v1467
        %v1469 = vadd.f32 %v1468, 1.1283791
        %v1470 = vmul.f32 %v1415, %v1469
        %v1471 = vmul.f32 %v1459, 3.8918573e-05
        %v1472 = vadd.f32 %v1471, 0.001143296
        %v1473 = vmul.f32 %v1459, %v1472
        %v1474 = vadd.f32 %v1473, 0.014752088
        %v1475 = vmul.f32 %v1459, %v1474
        %v1476 = vadd.f32 %v1475, 0.112945676
        %v1477 = vmul.f32 %v1459, %v1476
        %v1478 = vadd.f32 %v1477, 0.4994258
        %v1479 = vmul.f32 %v1459, %v1478
        %v1480 = vadd.f32 %v1479, 1.0
        %v1481 = vrcp.pop %v1480
        %v1482 = vmul.f32 %v1480, %v1481
        %v1483 = vsub.f32 1.0, %v1482
        %v1484 = vmul.f32 %v1481, %v1483
        %v1485 = vadd.f32 %v1481, %v1484
        %vm1486 = vweird.f32 %v1480
        %vm1487 = vweird.f32 %v1481
        %vm1488 = vmor %vm1486, %vm1487
        %v1489 = vsel %vm1488, %v1481, %v1485
        %v1490 = vand.u32 2147483647, %v1480
        %vm1491 = vcmp.eq.f32.partialorder %v1490, 8.507059e+37
        %v1492 = vand.u32 %v1480, 2147483648
        %v1493 = vor.u32 1.1754944e-38, %v1492
        %v1494 = vsel %vm1491, %v1493, %v1489
        %v1495 = vmul.f32 %v1470, %v1494
        %v1496 = vmin.f32 %v1495, 1.0
        %v1497 = vmax.f32 %v1496, -1.0
        %v1498 = vmul.f32 %v1416, %v1416
        %v1499 = vmin.f32 16.0, %v1498
        %v1500 = vmul.f32 %v1499, 2.1237322e-06
        %v1501 = vadd.f32 %v1500, 0.00028619796
        %v1502 = vmul.f32 %v1499, %v1501
        %v1503 = vadd.f32 %v1502, 0.0036580483
        %v1504 = vmul.f32 %v1499, %v1503
        %v1505 = vadd.f32 %v1504, 0.05243302
        %v1506 = vmul.f32 %v1499, %v1505
        %v1507 = vadd.f32 %v1506, 0.18741608
        %v1508 = vmul.f32 %v1499, %v1507
        %v1509 = vadd.f32 %v1508, 1.1283791
        %v1510 = vmul.f32 %v1416, %v1509
        %v1511 = vmul.f32 %v1499, 3.8918573e-05
        %v1512 = vadd.f32 %v1511, 0.001143296
        %v1513 = vmul.f32 %v1499, %v1512
        %v1514 = vadd.f32 %v1513, 0.014752088
        %v1515 = vmul.f32 %v1499, %v1514
        %v1516 = vadd.f32 %v1515, 0.112945676
        %v1517 = vmul.f32 %v1499, %v1516
        %v1518 = vadd.f32 %v1517, 0.4994258
        %v1519 = vmul.f32 %v1499, %v1518
        %v1520 = vadd.f32 %v1519, 1.0
        %v1521 = vrcp.pop %v1520
        %v1522 = vmul.f32 %v1520, %v1521
        %v1523 = vsub.f32 1.0, %v1522
        %v1524 = vmul.f32 %v1521, %v1523
        %v1525 = vadd.f32 %v1521, %v1524
        %vm1526 = vweird.f32 %v1520
        %vm1527 = vweird.f32 %v1521
        %vm1528 = vmor %vm1526, %vm1527
        %v1529 = vsel %vm1528, %v1521, %v1525
        %v1530 = vand.u32 2147483647, %v1520
        %vm1531 = vcmp.eq.f32.partialorder %v1530, 8.507059e+37
        %v1532 = vand.u32 %v1520, 2147483648
        %v1533 = vor.u32 1.1754944e-38, %v1532
        %v1534 = vsel %vm1531, %v1533, %v1529
        %v1535 = vmul.f32 %v1510, %v1534
        %v1536 = vmin.f32 %v1535, 1.0
        %v1537 = vmax.f32 %v1536, -1.0
        %v1538 = vmul.f32 %v1417, %v1417
        %v1539 = vmin.f32 16.0, %v1538
        %v1540 = vmul.f32 %v1539, 2.1237322e-06
        %v1541 = vadd.f32 %v1540, 0.00028619796
        %v1542 = vmul.f32 %v1539, %v1541
        %v1543 = vadd.f32 %v1542, 0.0036580483
        %v1544 = vmul.f32 %v1539, %v1543
        %v1545 = vadd.f32 %v1544, 0.05243302
        %v1546 = vmul.f32 %v1539, %v1545
        %v1547 = vadd.f32 %v1546, 0.18741608
        %v1548 = vmul.f32 %v1539, %v1547
        %v1549 = vadd.f32 %v1548, 1.1283791
        %v1550 = vmul.f32 %v1417, %v1549
        %v1551 = vmul.f32 %v1539, 3.8918573e-05
        %v1552 = vadd.f32 %v1551, 0.001143296
        %v1553 = vmul.f32 %v1539, %v1552
        %v1554 = vadd.f32 %v1553, 0.014752088
        %v1555 = vmul.f32 %v1539, %v1554
        %v1556 = vadd.f32 %v1555, 0.112945676
        %v1557 = vmul.f32 %v1539, %v1556
        %v1558 = vadd.f32 %v1557, 0.4994258
        %v1559 = vmul.f32 %v1539, %v1558
        %v1560 = vadd.f32 %v1559, 1.0
        %v1561 = vrcp.pop %v1560
        %v1562 = vmul.f32 %v1560, %v1561
        %v1563 = vsub.f32 1.0, %v1562
        %v1564 = vmul.f32 %v1561, %v1563
        %v1565 = vadd.f32 %v1561, %v1564
        %vm1566 = vweird.f32 %v1560
        %vm1567 = vweird.f32 %v1561
        %vm1568 = vmor %vm1566, %vm1567
        %v1569 = vsel %vm1568, %v1561, %v1565
        %v1570 = vand.u32 2147483647, %v1560
        %vm1571 = vcmp.eq.f32.partialorder %v1570, 8.507059e+37
        %v1572 = vand.u32 %v1560, 2147483648
        %v1573 = vor.u32 1.1754944e-38, %v1572
        %v1574 = vsel %vm1571, %v1573, %v1569
        %v1575 = vmul.f32 %v1550, %v1574
        %v1576 = vmin.f32 %v1575, 1.0
        %v1577 = vmax.f32 %v1576, -1.0
        %v1578 = vadd.f32 %v1457, 1.0
        %v1579 = vadd.f32 %v1497, 1.0
        %v1580 = vadd.f32 %v1537, 1.0
        %v1581 = vadd.f32 %v1577, 1.0
        %v1582 = vmul.f32 %v1410, %v1578
        %v1583 = vmul.f32 %v1411, %v1579
        %v1584 = vmul.f32 %v1412, %v1580
        %v1585 = vmul.f32 %v1413, %v1581
        %v1586 = vpack.c.bf16 %v1582, %v1582
        %v1587 = vpack.c.bf16 %v1583, %v1583
        %v1588 = vpack.c.bf16 %v1584, %v1584
        %v1589 = vpack.c.bf16 %v1585, %v1585
        %v1590 = vld [vmem:[%s444] sm:$0xf]
        %v1591 = vld [vmem:[%s444 + $0x4] sm:$0xf]
        %v1592 = vld [vmem:[%s444 + $0x8] sm:$0xf]
        %v1593 = vld [vmem:[%s444 + $0xc] sm:$0xf]
        %v1594 = vld [vmem:[%s444 + $0x10] sm:$0xf]
        %v1595 = vld [vmem:[%s444 + $0x14] sm:$0xf]
        %v1596 = vld [vmem:[%s444 + $0x18] sm:$0xf]
        %v1597 = vld [vmem:[%s444 + $0x1c] sm:$0xf]
        %v1598 = vld [vmem:[%s444 + $0x20] sm:$0xf]
        %v1599 = vld [vmem:[%s444 + $0x24] sm:$0xf]
        %v1600 = vld [vmem:[%s444 + $0x28] sm:$0xf]
        %v1601 = vld [vmem:[%s444 + $0x2c] sm:$0xf]
        %v1602 = vld [vmem:[%s444 + $0x30] sm:$0xf]
        %v1603 = vld [vmem:[%s444 + $0x34] sm:$0xf]
        %v1604 = vld [vmem:[%s444 + $0x38] sm:$0xf]
        %v1605 = vld [vmem:[%s444 + $0x3c] sm:$0xf]
        %v1606 = vld [vmem:[%s444 + $0x40] sm:$0xf]
        %v1607 = vld [vmem:[%s444 + $0x44] sm:$0xf]
        %v1608 = vld [vmem:[%s444 + $0x48] sm:$0xf]
        %v1609 = vld [vmem:[%s444 + $0x4c] sm:$0xf]
        %v1610 = vld [vmem:[%s444 + $0x50] sm:$0xf]
        %v1611 = vld [vmem:[%s444 + $0x54] sm:$0xf]
        %v1612 = vld [vmem:[%s444 + $0x58] sm:$0xf]
        %v1613 = vld [vmem:[%s444 + $0x5c] sm:$0xf]
        %v1614 = vld [vmem:[%s444 + $0x60] sm:$0xf]
        %v1615 = vld [vmem:[%s444 + $0x64] sm:$0xf]
        %v1616 = vld [vmem:[%s444 + $0x68] sm:$0xf]
        %v1617 = vld [vmem:[%s444 + $0x6c] sm:$0xf]
        %v1618 = vld [vmem:[%s444 + $0x70] sm:$0xf]
        %v1619 = vld [vmem:[%s444 + $0x74] sm:$0xf]
        %v1620 = vld [vmem:[%s444 + $0x78] sm:$0xf]
        %v1621 = vld [vmem:[%s444 + $0x7c] sm:$0xf]
        %v1622 = vld [vmem:[%s444 + $0x80] sm:$0xf]
        %v1623 = vld [vmem:[%s444 + $0x84] sm:$0xf]
        %v1624 = vld [vmem:[%s444 + $0x88] sm:$0xf]
        %v1625 = vld [vmem:[%s444 + $0x8c] sm:$0xf]
        %v1626 = vld [vmem:[%s444 + $0x90] sm:$0xf]
        %v1627 = vld [vmem:[%s444 + $0x94] sm:$0xf]
        %v1628 = vld [vmem:[%s444 + $0x98] sm:$0xf]
        %v1629 = vld [vmem:[%s444 + $0x9c] sm:$0xf]
        %v1630 = vld [vmem:[%s444 + $0xa0] sm:$0xf]
        %v1631 = vld [vmem:[%s444 + $0xa4] sm:$0xf]
        %v1632 = vld [vmem:[%s444 + $0xa8] sm:$0xf]
        %v1633 = vld [vmem:[%s444 + $0xac] sm:$0xf]
        %v1634 = vld [vmem:[%s444 + $0xb0] sm:$0xf]
        %v1635 = vld [vmem:[%s444 + $0xb4] sm:$0xf]
        %v1636 = vld [vmem:[%s444 + $0xb8] sm:$0xf]
        %v1637 = vld [vmem:[%s444 + $0xbc] sm:$0xf]
        %v1638 = vld [vmem:[%s444 + $0xc0] sm:$0xf]
        %v1639 = vld [vmem:[%s444 + $0xc4] sm:$0xf]
        %v1640 = vld [vmem:[%s444 + $0xc8] sm:$0xf]
        %v1641 = vld [vmem:[%s444 + $0xcc] sm:$0xf]
        %v1642 = vld [vmem:[%s444 + $0xd0] sm:$0xf]
        %v1643 = vld [vmem:[%s444 + $0xd4] sm:$0xf]
        %v1644 = vld [vmem:[%s444 + $0xd8] sm:$0xf]
        %v1645 = vld [vmem:[%s444 + $0xdc] sm:$0xf]
        %v1646 = vld [vmem:[%s444 + $0xe0] sm:$0xf]
        %v1647 = vld [vmem:[%s444 + $0xe4] sm:$0xf]
        %v1648 = vld [vmem:[%s444 + $0xe8] sm:$0xf]
        %v1649 = vld [vmem:[%s444 + $0xec] sm:$0xf]
        %v1650 = vld [vmem:[%s444 + $0xf0] sm:$0xf]
        %v1651 = vld [vmem:[%s444 + $0xf4] sm:$0xf]
        %v1652 = vld [vmem:[%s444 + $0xf8] sm:$0xf]
        %v1653 = vld [vmem:[%s444 + $0xfc] sm:$0xf]
        %v1718 = vunpack.c.l.b16 %v1590
        %v1719 = vunpack.c.l.b16 %v1591
        %v1720 = vunpack.c.l.b16 %v1592
        %v1721 = vunpack.c.l.b16 %v1593
        %v1722 = vunpack.c.l.b16 %v1594
        %v1723 = vunpack.c.l.b16 %v1595
        %v1724 = vunpack.c.l.b16 %v1596
        %v1725 = vunpack.c.l.b16 %v1597
        %v1726 = vunpack.c.l.b16 %v1598
        %v1727 = vunpack.c.l.b16 %v1599
        %v1728 = vunpack.c.l.b16 %v1600
        %v1729 = vunpack.c.l.b16 %v1601
        %v1730 = vunpack.c.l.b16 %v1602
        %v1731 = vunpack.c.l.b16 %v1603
        %v1732 = vunpack.c.l.b16 %v1604
        %v1733 = vunpack.c.l.b16 %v1605
        %v1734 = vunpack.c.l.b16 %v1606
        %v1735 = vunpack.c.l.b16 %v1607
        %v1736 = vunpack.c.l.b16 %v1608
        %v1737 = vunpack.c.l.b16 %v1609
        %v1738 = vunpack.c.l.b16 %v1610
        %v1739 = vunpack.c.l.b16 %v1611
        %v1740 = vunpack.c.l.b16 %v1612
        %v1741 = vunpack.c.l.b16 %v1613
        %v1742 = vunpack.c.l.b16 %v1614
        %v1743 = vunpack.c.l.b16 %v1615
        %v1744 = vunpack.c.l.b16 %v1616
        %v1745 = vunpack.c.l.b16 %v1617
        %v1746 = vunpack.c.l.b16 %v1618
        %v1747 = vunpack.c.l.b16 %v1619
        %v1748 = vunpack.c.l.b16 %v1620
        %v1749 = vunpack.c.l.b16 %v1621
        %v1750 = vunpack.c.l.b16 %v1622
        %v1751 = vunpack.c.l.b16 %v1623
        %v1752 = vunpack.c.l.b16 %v1624
        %v1753 = vunpack.c.l.b16 %v1625
        %v1754 = vunpack.c.l.b16 %v1626
        %v1755 = vunpack.c.l.b16 %v1627
        %v1756 = vunpack.c.l.b16 %v1628
        %v1757 = vunpack.c.l.b16 %v1629
        %v1758 = vunpack.c.l.b16 %v1630
        %v1759 = vunpack.c.l.b16 %v1631
        %v1760 = vunpack.c.l.b16 %v1632
        %v1761 = vunpack.c.l.b16 %v1633
        %v1762 = vunpack.c.l.b16 %v1634
        %v1763 = vunpack.c.l.b16 %v1635
        %v1764 = vunpack.c.l.b16 %v1636
        %v1765 = vunpack.c.l.b16 %v1637
        %v1766 = vunpack.c.l.b16 %v1638
        %v1767 = vunpack.c.l.b16 %v1639
        %v1768 = vunpack.c.l.b16 %v1640
        %v1769 = vunpack.c.l.b16 %v1641
        %v1770 = vunpack.c.l.b16 %v1642
        %v1771 = vunpack.c.l.b16 %v1643
        %v1772 = vunpack.c.l.b16 %v1644
        %v1773 = vunpack.c.l.b16 %v1645
        %v1774 = vunpack.c.l.b16 %v1646
        %v1775 = vunpack.c.l.b16 %v1647
        %v1776 = vunpack.c.l.b16 %v1648
        %v1777 = vunpack.c.l.b16 %v1649
        %v1778 = vunpack.c.l.b16 %v1650
        %v1779 = vunpack.c.l.b16 %v1651
        %v1780 = vunpack.c.l.b16 %v1652
        %v1781 = vunpack.c.l.b16 %v1653
        %v1782 = vpack.c.b16 %v1719, %v1718
        %v1783 = vpack.c.b16 %v1721, %v1720
        %v1784 = vpack.c.b16 %v1723, %v1722
        %v1785 = vpack.c.b16 %v1725, %v1724
        %v1786 = vpack.c.b16 %v1727, %v1726
        %v1787 = vpack.c.b16 %v1729, %v1728
        %v1788 = vpack.c.b16 %v1731, %v1730
        %v1789 = vpack.c.b16 %v1733, %v1732
        %v1790 = vpack.c.b16 %v1735, %v1734
        %v1791 = vpack.c.b16 %v1737, %v1736
        %v1792 = vpack.c.b16 %v1739, %v1738
        %v1793 = vpack.c.b16 %v1741, %v1740
        %v1794 = vpack.c.b16 %v1743, %v1742
        %v1795 = vpack.c.b16 %v1745, %v1744
        %v1796 = vpack.c.b16 %v1747, %v1746
        %v1797 = vpack.c.b16 %v1749, %v1748
        %v1798 = vpack.c.b16 %v1751, %v1750
        %v1799 = vpack.c.b16 %v1753, %v1752
        %v1800 = vpack.c.b16 %v1755, %v1754
        %v1801 = vpack.c.b16 %v1757, %v1756
        %v1802 = vpack.c.b16 %v1759, %v1758
        %v1803 = vpack.c.b16 %v1761, %v1760
        %v1804 = vpack.c.b16 %v1763, %v1762
        %v1805 = vpack.c.b16 %v1765, %v1764
        %v1806 = vpack.c.b16 %v1767, %v1766
        %v1807 = vpack.c.b16 %v1769, %v1768
        %v1808 = vpack.c.b16 %v1771, %v1770
        %v1809 = vpack.c.b16 %v1773, %v1772
        %v1810 = vpack.c.b16 %v1775, %v1774
        %v1811 = vpack.c.b16 %v1777, %v1776
        %v1812 = vpack.c.b16 %v1779, %v1778
        %v1813 = vpack.c.b16 %v1781, %v1780
        %1846 = vmatpush.bf16.msra.mxu0 %v1789
        %1847 = vmatpush.bf16.msra.mxu0 %v1788
        %1848 = vmatpush.bf16.msra.mxu0 %v1787
        %1849 = vmatpush.bf16.msra.mxu0 %v1786
        %1850 = vmatpush.bf16.msra.mxu0 %v1785
        %1851 = vmatpush.bf16.msra.mxu0 %v1784
        %1852 = vmatpush.bf16.msra.mxu0 %v1783
        %1853 = vmatpush.bf16.msra.mxu0 %v1782
        %1854 = vmatmul.bf16.gmra.mxu0 %v1586
        %v1855 = vpop.f32.mrf.mxu0
        %v1856 = vadd.f32 0.0, %v1855
        %v1857 = vpop.f32.mrf.mxu0
        %1858 = vdwg.mxu0
        %1859 = vmatpush.bf16.msra.mxu0 %v1797
        %1860 = vmatpush.bf16.msra.mxu0 %v1796
        %1861 = vmatpush.bf16.msra.mxu0 %v1795
        %1862 = vmatpush.bf16.msra.mxu0 %v1794
        %1863 = vmatpush.bf16.msra.mxu0 %v1793
        %1864 = vmatpush.bf16.msra.mxu0 %v1792
        %1865 = vmatpush.bf16.msra.mxu0 %v1791
        %1866 = vmatpush.bf16.msra.mxu0 %v1790
        %1867 = vmatmul.bf16.gmra.mxu0 %v1587
        %v1868 = vpop.f32.mrf.mxu0
        %v1869 = vadd.f32 %v1856, %v1868
        %v1870 = vpop.f32.mrf.mxu0
        %1871 = vdwg.mxu0
        %1872 = vmatpush.bf16.msra.mxu0 %v1805
        %1873 = vmatpush.bf16.msra.mxu0 %v1804
        %1874 = vmatpush.bf16.msra.mxu0 %v1803
        %1875 = vmatpush.bf16.msra.mxu0 %v1802
        %1876 = vmatpush.bf16.msra.mxu0 %v1801
        %1877 = vmatpush.bf16.msra.mxu0 %v1800
        %1878 = vmatpush.bf16.msra.mxu0 %v1799
        %1879 = vmatpush.bf16.msra.mxu0 %v1798
        %1880 = vmatmul.bf16.gmra.mxu0 %v1588
        %v1881 = vpop.f32.mrf.mxu0
        %v1882 = vadd.f32 %v1869, %v1881
        %v1883 = vpop.f32.mrf.mxu0
        %1884 = vdwg.mxu0
        %1885 = vmatpush.bf16.msra.mxu0 %v1813
        %1886 = vmatpush.bf16.msra.mxu0 %v1812
        %1887 = vmatpush.bf16.msra.mxu0 %v1811
        %1888 = vmatpush.bf16.msra.mxu0 %v1810
        %1889 = vmatpush.bf16.msra.mxu0 %v1809
        %1890 = vmatpush.bf16.msra.mxu0 %v1808
        %1891 = vmatpush.bf16.msra.mxu0 %v1807
        %1892 = vmatpush.bf16.msra.mxu0 %v1806
        %1893 = vmatmul.bf16.gmra.mxu0 %v1589
        %v1894 = vpop.f32.mrf.mxu0
        %v1895 = vadd.f32 %v1882, %v1894
        %v1896 = vpop.f32.mrf.mxu0
        %1897 = vdwg.mxu0
        %v1898 = vadd.f32 %v1139, %v1895
        %1899 = vst [vmem:[#allocation2] sm:$0xff] %v1898
        %p1900 = scmp.eq.s32.totalorder %s32, 1
        // Predicated region
        $region77: #{transformation_healer_forward.3} parent=59 // pred_check
          %p1901 = pneg %p1900
        $region78: #{transformation_healer_forward.3} parent=59 // pred_check_branch
          %1903 = sbr.rel (%p1901) target = $region80
        $region79: #{transformation_healer_forward.3} parent=59 // pred_region
          %v1904 = vld [vmem:[%s7] sm:$0x1]
          %vm1905 = vcmask 1040384
          %v1906 = vsel %vm1905, %v1898, 0.0
          %1907 = vadd.xlane.f32.xlu0 %v1906
          %v1908 = vpop.xlane.xlu0 %1907
          %v1909 = vmul.f32 %v1908, %v550
          %v1910 = vsub.f32 %v1898, %v1909
          %v1911 = vmul.f32 %v1910, %v1910
          %v1912 = vsel %vm1905, %v1911, 0.0
          %1913 = vadd.xlane.f32.xlu0 %v1912
          %v1914 = vpop.xlane.xlu0 %1913
          %v1915 = vmul.f32 %v1914, %v550
          %v1916 = vadd.f32 %v1915, 1e-05
          %v1917 = vrsqrt.pop %v1916
          %v1918 = vmul.f32 %v1917, %v1916
          %v1919 = vmul.f32 %v1918, %v1917
          %v1920 = vmul.f32 0.5, %v1919
          %v1921 = vsub.f32 1.5, %v1920
          %v1922 = vmul.f32 %v1917, %v1921
          %vm1923 = vweird.f32 %v1916
          %vm1924 = vweird.f32 %v1917
          %vm1925 = vmor %vm1923, %vm1924
          %v1926 = vsel %vm1925, %v1917, %v1922
          %v1927 = vmul.f32 %v1910, %v1926
          %v1928 = vmul.f32 %v1927, %v1904
          %v1929 = vpack.c.bf16 %v1928, %v1928
          %v1930 = vld [vmem:[#allocation7] sm:$0xf]
          %v1931 = vld [vmem:[#allocation7 + $0x4] sm:$0xf]
          %v1932 = vld [vmem:[#allocation7 + $0x8] sm:$0xf]
          %v1933 = vld [vmem:[#allocation7 + $0xc] sm:$0xf]
          %v1934 = vld [vmem:[#allocation7 + $0x10] sm:$0xf]
          %v1935 = vld [vmem:[#allocation7 + $0x14] sm:$0xf]
          %v1936 = vld [vmem:[#allocation7 + $0x18] sm:$0xf]
          %v1937 = vld [vmem:[#allocation7 + $0x1c] sm:$0xf]
          %v1938 = vld [vmem:[#allocation7 + $0x20] sm:$0xf]
          %v1939 = vld [vmem:[#allocation7 + $0x24] sm:$0xf]
          %v1940 = vld [vmem:[#allocation7 + $0x28] sm:$0xf]
          %v1941 = vld [vmem:[#allocation7 + $0x2c] sm:$0xf]
          %v1942 = vld [vmem:[#allocation7 + $0x30] sm:$0xf]
          %v1943 = vld [vmem:[#allocation7 + $0x34] sm:$0xf]
          %v1944 = vld [vmem:[#allocation7 + $0x38] sm:$0xf]
          %v1945 = vld [vmem:[#allocation7 + $0x3c] sm:$0xf]
          %v1946 = vld [vmem:[%s9] sm:$0x1]
          %v1963 = vunpack.c.l.b16 %v1930
          %v1964 = vunpack.c.l.b16 %v1931
          %v1965 = vunpack.c.l.b16 %v1932
          %v1966 = vunpack.c.l.b16 %v1933
          %v1967 = vunpack.c.l.b16 %v1934
          %v1968 = vunpack.c.l.b16 %v1935
          %v1969 = vunpack.c.l.b16 %v1936
          %v1970 = vunpack.c.l.b16 %v1937
          %v1971 = vunpack.c.l.b16 %v1938
          %v1972 = vunpack.c.l.b16 %v1939
          %v1973 = vunpack.c.l.b16 %v1940
          %v1974 = vunpack.c.l.b16 %v1941
          %v1975 = vunpack.c.l.b16 %v1942
          %v1976 = vunpack.c.l.b16 %v1943
          %v1977 = vunpack.c.l.b16 %v1944
          %v1978 = vunpack.c.l.b16 %v1945
          %v1979 = vpack.c.b16 %v1964, %v1963
          %v1980 = vpack.c.b16 %v1966, %v1965
          %v1981 = vpack.c.b16 %v1968, %v1967
          %v1982 = vpack.c.b16 %v1970, %v1969
          %v1983 = vpack.c.b16 %v1972, %v1971
          %v1984 = vpack.c.b16 %v1974, %v1973
          %v1985 = vpack.c.b16 %v1976, %v1975
          %v1986 = vpack.c.b16 %v1978, %v1977
          %1995 = vmatpush.bf16.msra.mxu0 %v1986
          %1996 = vmatpush.bf16.msra.mxu0 %v1985
          %1997 = vmatpush.bf16.msra.mxu0 %v1984
          %1998 = vmatpush.bf16.msra.mxu0 %v1983
          %1999 = vmatpush.bf16.msra.mxu0 %v1982
          %2000 = vmatpush.bf16.msra.mxu0 %v1981
          %2001 = vmatpush.bf16.msra.mxu0 %v1980
          %2002 = vmatpush.bf16.msra.mxu0 %v1979
          %2003 = vmatmul.bf16.gmra.mxu0 %v1929
          %v2004 = vpop.f32.mrf.mxu0
          %v2005 = vadd.f32 %v1946, %v2004
          %v2006 = vpop.f32.mrf.mxu0
          %2007 = vdwg.mxu0
          %2008 = vst [vmem:[%s532] sm:$0x1] %v2005
        $region80: #{transformation_healer_forward.3} parent=59 // pred_fallthru
          _
        %p2009 = scmp.lt.s32.totalorder %s31, 1
        %s2010 = scalar_select %p2009, %s31, 1
        %s2011 = scalar_lea.vmem %s10, %s2010
        // Predicated region
        $region81: #{transformation_healer_forward.3} parent=59 // pred_check
          %p2012 = pneg %p302
        $region82: #{transformation_healer_forward.3} parent=59 // pred_check_branch
          %2014 = sbr.rel (%p2012) target = $region84
        $region83: #{transformation_healer_forward.3} parent=59 // pred_region
          _
        $region84: #{transformation_healer_forward.3} parent=59 // pred_fallthru
          _
      $region60: #{transformation_healer_forward.3} parent=5 // pred_fallthru
        _
      %p2015 = scmp.le.s32.totalorder 2, %s22
      // Predicated region
      $region85: #{transformation_healer_forward.3} parent=5 // pred_check
        %p2016 = pneg %p2015
      $region86: #{transformation_healer_forward.3} parent=5 // pred_check_branch
        %2018 = sbr.rel (%p2016) target = $region88
      $region87: #{transformation_healer_forward.3} parent=5 // pred_region
        %s2019 = ssub.s32 %s22, 2
        // Predicated region
        $region89: #{transformation_healer_forward.3} parent=87 // pred_check
          %p2020 = pneg %p308
        $region90: #{transformation_healer_forward.3} parent=87 // pred_check_branch
          %2022 = sbr.rel (%p2020) target = $region92
        $region91: #{transformation_healer_forward.3} parent=87 // pred_region
          %p2023 = scmp.lt.s32.totalorder %s33, 1
          %s2024 = scalar_select %p2023, %s33, 1
          %s2025 = scalar_lea.vmem %s10, %s2024
        $region92: #{transformation_healer_forward.3} parent=87 // pred_fallthru
          _
      $region88: #{transformation_healer_forward.3} parent=5 // pred_fallthru
        _
    $region6: #{transformation_healer_forward.3} parent=1 // loop_footer
      %s26 = sadd.s32 1, %s22
    $region7: #{transformation_healer_forward.3} parent=1 // loop_footer_branch
      %21 = sbr.rel target = $region3
    $region8: #{transformation_healer_forward.3} parent=1 // loop_exit
      _
    %2026 = vsyncpa [#allocation4], 1
    %s2027 = scalar_lea.sflag [#allocation4], 1
    %2028 = vsyncpa %s2027, 1
    %2029 = vsyncpa [#allocation6], 1
    %s2030 = scalar_lea.sflag [#allocation6], 1
    %2031 = vsyncpa %s2030, 1

</llo_original>
